<compile_context>
chip_gen: v7x
topology: tpu7x:2x2x1
jax: 0.10.0
libtpu: 0.0.40
codegen_flags: <defaults>
</compile_context>

<pallas_src>
import functools

import jax
import jax.numpy as jnp
from jax.experimental import pallas as pl
from jax.experimental.pallas import tpu as pltpu

_LANE = 128
_SUBLANE = 8


def _round_up(x, m):
    return ((x + m - 1) // m) * m


def _blend_kernel(p2f_ref, dists_ref, zbuf_ref, colors_ref, out_ref, *,
                  inv_sigma, inv_gamma, zfar, inv_z_range, background,
                  chunk_rows):
    """One pixel tile of the soft-rasterizer feature blend.

    Ref shapes (pixel tile = tile_r rows x 128 lanes):
      p2f_ref / dists_ref / zbuf_ref : (K, tile_r, 128)
      colors_ref                     : (C, K, tile_r, 128)
      out_ref                        : (C + 1, tile_r, 128)
    """
    eps = 1e-10
    K = p2f_ref.shape[0]
    C = colors_ref.shape[0]
    tile_r = p2f_ref.shape[1]
    lane = p2f_ref.shape[2]

    # Walk the tile in small row-chunks: big DMA tiles, small register live set.
    for r0 in range(0, tile_r, chunk_rows):
        rs = slice(r0, r0 + chunk_rows)

        # ---- Pass 1 over K: running max of z_inv (unrolled, pure VPU) ------
        z_max = jnp.full((chunk_rows, lane), eps, jnp.float32)
        for k in range(K):
            mask_k = (p2f_ref[k, rs, :] >= 0).astype(jnp.float32)
            z_inv_k = (zfar - zbuf_ref[k, rs, :]) * inv_z_range * mask_k
            z_max = jnp.maximum(z_max, z_inv_k)

        delta = jnp.maximum(jnp.exp((eps - z_max) * inv_gamma), eps)
        denom = delta
        alpha = jnp.ones_like(z_max)
        col = [jnp.zeros_like(z_max) for _ in range(C)]

        # ---- Pass 2 over K: alpha product, softmax weights, weighted colors -
        for k in range(K):
            mask_k = (p2f_ref[k, rs, :] >= 0).astype(jnp.float32)
            # sigmoid(-d/sigma) == 0.5 - 0.5*tanh(d/(2*sigma)): EUP tanh,
            # no f32 divide on the VPU.
            prob_k = (0.5 - 0.5 * jnp.tanh(
                dists_ref[k, rs, :] * (0.5 * inv_sigma))) * mask_k
            alpha = alpha * (1.0 - prob_k)
            z_inv_k = (zfar - zbuf_ref[k, rs, :]) * inv_z_range * mask_k
            w_k = prob_k * jnp.exp((z_inv_k - z_max) * inv_gamma)
            denom = denom + w_k
            for c in range(C):
                col[c] = col[c] + w_k * colors_ref[c, k, rs, :]

        inv_denom = pl.reciprocal(denom, approx=True)   # EUP slot, ~free
        # Full-lane unmasked stores, one sublane-row-group per channel.
        for c in range(C):
            out_ref[c, rs, :] = ((col[c] + delta * background[c]) * inv_denom
                                 ).astype(out_ref.dtype)
        out_ref[C, rs, :] = (1.0 - alpha).astype(out_ref.dtype)


def softmax_feature_blend_pallas(colors, pix_to_face, dists, zbuf, *,
                                 sigma, gamma, background,
                                 znear=1.0, zfar=100.0, tile_pixels=4096):
    """colors: (N,H,W,K,C); pix_to_face/dists/zbuf: (N,H,W,K) -> (N,H,W,C+1)."""
    N, H, W, K = pix_to_face.shape
    C = colors.shape[-1]
    P = N * H * W

    # Background as compile-time scalars (avoids capturing an f32[C] constant).
    bg = tuple(float(b) for b in background)
    if len(bg) == 1:
        bg = bg * C
    assert len(bg) == C, "background_color length must match feature channels"

    # ---- tiling: pixels lane-dense; tile = tile_r rows of 128 pixels --------
    pr = _round_up(pl.cdiv(P, _LANE), _SUBLANE)          # rows of 128 pixels
    tile_r = max(_SUBLANE, min(tile_pixels // _LANE, pr))
    tile_r = (tile_r // _SUBLANE) * _SUBLANE
    if pr >= 2 * _SUBLANE:                               # keep grid >= 2 (v7x megacore)
        tile_r = min(tile_r, max(_SUBLANE, _round_up(pl.cdiv(pr, 2), _SUBLANE)))
    grid = pl.cdiv(pr, tile_r)
    pr_pad = grid * tile_r
    P_pad = pr_pad * _LANE

    # ---- relayout: pixels on (sublane, lane); K / C as small leading axes ---
    def to_kp(x, pad_value, dtype):
        x = x.reshape(P, K).astype(dtype)
        x = jnp.pad(x, ((0, P_pad - P), (0, 0)), constant_values=pad_value)
        return x.reshape(pr_pad, _LANE, K).transpose(2, 0, 1)   # (K, pr, 128)

    p2f_t = to_kp(pix_to_face, -1, jnp.int32)        # padded pixels -> mask=0
    dists_t = to_kp(dists, 0.0, jnp.float32)
    zbuf_t = to_kp(zbuf, 0.0, jnp.float32)

    colors_f = colors.reshape(P, K, C).astype(jnp.float32)
    colors_f = jnp.pad(colors_f, ((0, P_pad - P), (0, 0), (0, 0)))
    colors_t = colors_f.reshape(pr_pad, _LANE, K, C).transpose(3, 2, 0, 1)  # (C,K,pr,128)

    kernel = functools.partial(
        _blend_kernel,
        inv_sigma=1.0 / float(sigma),
        inv_gamma=1.0 / float(gamma),
        zfar=float(zfar),
        inv_z_range=1.0 / (float(zfar) - float(znear)),
        background=bg,
        chunk_rows=_SUBLANE,
    )

    out = pl.pallas_call(
        kernel,
        out_shape=jax.ShapeDtypeStruct((C + 1, pr_pad, _LANE), colors.dtype),
        grid_spec=pltpu.PrefetchScalarGridSpec(
            num_scalar_prefetch=0,
            grid=(grid,),
            in_specs=[
                pl.BlockSpec((K, tile_r, _LANE), lambda i: (0, i, 0)),        # pix_to_face
                pl.BlockSpec((K, tile_r, _LANE), lambda i: (0, i, 0)),        # dists
                pl.BlockSpec((K, tile_r, _LANE), lambda i: (0, i, 0)),        # zbuf
                pl.BlockSpec((C, K, tile_r, _LANE), lambda i: (0, 0, i, 0)),  # colors
            ],
            out_specs=pl.BlockSpec((C + 1, tile_r, _LANE), lambda i: (0, i, 0)),
        ),
        compiler_params=pltpu.CompilerParams(
            dimension_semantics=("parallel",)),
    )(p2f_t, dists_t, zbuf_t, colors_t)

    # (C+1, pr_pad, 128) -> (P, C+1) -> (N, H, W, C+1)
    out = out.transpose(1, 2, 0).reshape(P_pad, C + 1)[:P]
    return out.reshape(N, H, W, C + 1)


class FeatureShaderPallas:
    """JAX/Pallas port of FeatureShader.

    forward(texels, pix_to_face, dists, zbuf) -> (N, H, W, C+1)
    # TODO(synk): meshes.sample_textures (pytorch3d barycentric texture
    # sampling) has no clean Pallas equivalent here; texels are passed in
    # directly (exactly what softmax_feature_blend consumes).
    """

    def __init__(self, sigma=1e-4, gamma=1e-4, background_color=(1.0, 1.0, 1.0),
                 znear=1.0, zfar=100.0):
        self.sigma = sigma
        self.gamma = gamma
        self.background_color = background_color
        self.znear = znear
        self.zfar = zfar

    def forward(self, texels, pix_to_face, dists, zbuf):
        return softmax_feature_blend_pallas(
            texels, pix_to_face, dists, zbuf,
            sigma=self.sigma, gamma=self.gamma,
            background=self.background_color,
            znear=self.znear, zfar=self.zfar,
        )


def _blend_reference(colors, pix_to_face, dists, zbuf, *, sigma, gamma,
                     background, znear=1.0, zfar=100.0):
    """Pure-jnp reference (mirrors the PyTorch math) for a sanity check."""
    eps = 1e-10
    background = jnp.asarray(background, jnp.float32)
    mask = (pix_to_face >= 0).astype(jnp.float32)
    prob = jax.nn.sigmoid(-dists / sigma) * mask
    alpha = jnp.prod(1.0 - prob, axis=-1)
    z_inv = (zfar - zbuf) / (zfar - znear) * mask
    z_inv_max = jnp.maximum(jnp.max(z_inv, axis=-1, keepdims=True), eps)
    weights_num = prob * jnp.exp((z_inv - z_inv_max) / gamma)
    delta = jnp.maximum(jnp.exp((eps - z_inv_max) / gamma), eps)
    denom = jnp.sum(weights_num, axis=-1, keepdims=True) + delta
    weighted_colors = jnp.sum(weights_num[..., None] * colors, axis=-2)
    weighted_background = delta * background
    rgb = (weighted_colors + weighted_background) / denom
    return jnp.concatenate([rgb, (1.0 - alpha)[..., None]], axis=-1)


if __name__ == "__main__":
    # Small shapes consistent with the module: N=2, H=W=16, K=8 faces/pixel,
    # C=3 feature ("RGB") channels.
    N, H, W, K, C = 2, 16, 16, 8, 3
    key = jax.random.PRNGKey(0)
    k1, k2, k3, k4 = jax.random.split(key, 4)

    texels = jax.random.uniform(k1, (N, H, W, K, C), dtype=jnp.float32)
    dists = jax.random.uniform(k2, (N, H, W, K), dtype=jnp.float32,
                               minval=0.0, maxval=0.05)
    zbuf = jax.random.uniform(k3, (N, H, W, K), dtype=jnp.float32,
                              minval=1.0, maxval=100.0)
    # ~25% of fragments are "empty" (pix_to_face < 0).
    pix_to_face = jnp.where(
        jax.random.uniform(k4, (N, H, W, K)) < 0.25,
        jnp.int32(-1),
        jax.random.randint(k4, (N, H, W, K), 0, 1000, dtype=jnp.int32),
    )

    shader = FeatureShaderPallas(sigma=1e-2, gamma=1e-2,
                                 background_color=(1.0, 1.0, 1.0),
                                 znear=1.0, zfar=100.0)

    out = shader.forward(texels, pix_to_face, dists, zbuf)
    out = jax.block_until_ready(out)
    assert out.shape == (N, H, W, C + 1)

    ref = _blend_reference(texels, pix_to_face, dists, zbuf,
                           sigma=shader.sigma, gamma=shader.gamma,
                           background=shader.background_color,
                           znear=shader.znear, zfar=shader.zfar)
    assert jnp.allclose(out, ref, rtol=5e-3, atol=5e-3), "mismatch vs reference"

    print("KERNEL_OK")
</pallas_src>

<mosaic_0001>
module attributes {stable_mosaic.version = 11 : i64} {
  func.func @_blend_kernel(%arg0: i32, %arg1: memref<8x8x128xi32, #tpu.memory_space<vmem>>, %arg2: memref<8x8x128xf32, #tpu.memory_space<vmem>>, %arg3: memref<8x8x128xf32, #tpu.memory_space<vmem>>, %arg4: memref<3x8x8x128xf32, #tpu.memory_space<vmem>>, %arg5: memref<4x8x128xf32, #tpu.memory_space<vmem>>) attributes {dimension_semantics = [#tpu.dimension_semantics<parallel>], iteration_bounds = array<i64: 1>, scalar_prefetch = 0 : i64, scratch_operands = 0 : i64, tpu.core_type = #tpu.core_type<tc>, window_params = [{transform_indices = @transform_0, window_bounds = array<i64: 8, 8, 128>}, {transform_indices = @transform_1, window_bounds = array<i64: 8, 8, 128>}, {transform_indices = @transform_2, window_bounds = array<i64: 8, 8, 128>}, {transform_indices = @transform_3, window_bounds = array<i64: 3, 8, 8, 128>}, {transform_indices = @transform_4, window_bounds = array<i64: 4, 8, 128>}]} {
    %cst = arith.constant 1.000000e-10 : f32
    %0 = vector.broadcast %cst : f32 to vector<8x128xf32>
    %c0 = arith.constant 0 : index
    %c0_0 = arith.constant 0 : index
    %c0_1 = arith.constant 0 : index
    %1 = vector.load %arg1[%c0, %c0_0, %c0_1] : memref<8x8x128xi32, #tpu.memory_space<vmem>>, vector<1x8x128xi32>
    %2 = vector.shape_cast %1 : vector<1x8x128xi32> to vector<8x128xi32>
    %c0_i32 = arith.constant 0 : i32
    %3 = vector.broadcast %c0_i32 : i32 to vector<8x128xi32>
    %4 = arith.cmpi sge, %2, %3 : vector<8x128xi32>
    %5 = arith.extui %4 : vector<8x128xi1> to vector<8x128xi32>
    %6 = arith.sitofp %5 : vector<8x128xi32> to vector<8x128xf32>
    %c0_2 = arith.constant 0 : index
    %c0_3 = arith.constant 0 : index
    %c0_4 = arith.constant 0 : index
    %7 = vector.load %arg3[%c0_2, %c0_3, %c0_4] : memref<8x8x128xf32, #tpu.memory_space<vmem>>, vector<1x8x128xf32>
    %8 = vector.shape_cast %7 : vector<1x8x128xf32> to vector<8x128xf32>
    %cst_5 = arith.constant 1.000000e+02 : f32
    %9 = vector.broadcast %cst_5 : f32 to vector<8x128xf32>
    %10 = arith.subf %9, %8 : vector<8x128xf32>
    %cst_6 = arith.constant 0.0101010101 : f32
    %11 = vector.broadcast %cst_6 : f32 to vector<8x128xf32>
    %12 = arith.mulf %10, %11 : vector<8x128xf32>
    %13 = arith.mulf %12, %6 : vector<8x128xf32>
    %14 = arith.maximumf %0, %13 : vector<8x128xf32>
    %c1 = arith.constant 1 : index
    %c0_7 = arith.constant 0 : index
    %c0_8 = arith.constant 0 : index
    %15 = vector.load %arg1[%c1, %c0_7, %c0_8] : memref<8x8x128xi32, #tpu.memory_space<vmem>>, vector<1x8x128xi32>
    %16 = vector.shape_cast %15 : vector<1x8x128xi32> to vector<8x128xi32>
    %c0_i32_9 = arith.constant 0 : i32
    %17 = vector.broadcast %c0_i32_9 : i32 to vector<8x128xi32>
    %18 = arith.cmpi sge, %16, %17 : vector<8x128xi32>
    %19 = arith.extui %18 : vector<8x128xi1> to vector<8x128xi32>
    %20 = arith.sitofp %19 : vector<8x128xi32> to vector<8x128xf32>
    %c1_10 = arith.constant 1 : index
    %c0_11 = arith.constant 0 : index
    %c0_12 = arith.constant 0 : index
    %21 = vector.load %arg3[%c1_10, %c0_11, %c0_12] : memref<8x8x128xf32, #tpu.memory_space<vmem>>, vector<1x8x128xf32>
    %22 = vector.shape_cast %21 : vector<1x8x128xf32> to vector<8x128xf32>
    %cst_13 = arith.constant 1.000000e+02 : f32
    %23 = vector.broadcast %cst_13 : f32 to vector<8x128xf32>
    %24 = arith.subf %23, %22 : vector<8x128xf32>
    %cst_14 = arith.constant 0.0101010101 : f32
    %25 = vector.broadcast %cst_14 : f32 to vector<8x128xf32>
    %26 = arith.mulf %24, %25 : vector<8x128xf32>
    %27 = arith.mulf %26, %20 : vector<8x128xf32>
    %28 = arith.maximumf %14, %27 : vector<8x128xf32>
    %c2 = arith.constant 2 : index
    %c0_15 = arith.constant 0 : index
    %c0_16 = arith.constant 0 : index
    %29 = vector.load %arg1[%c2, %c0_15, %c0_16] : memref<8x8x128xi32, #tpu.memory_space<vmem>>, vector<1x8x128xi32>
    %30 = vector.shape_cast %29 : vector<1x8x128xi32> to vector<8x128xi32>
    %c0_i32_17 = arith.constant 0 : i32
    %31 = vector.broadcast %c0_i32_17 : i32 to vector<8x128xi32>
    %32 = arith.cmpi sge, %30, %31 : vector<8x128xi32>
    %33 = arith.extui %32 : vector<8x128xi1> to vector<8x128xi32>
    %34 = arith.sitofp %33 : vector<8x128xi32> to vector<8x128xf32>
    %c2_18 = arith.constant 2 : index
    %c0_19 = arith.constant 0 : index
    %c0_20 = arith.constant 0 : index
    %35 = vector.load %arg3[%c2_18, %c0_19, %c0_20] : memref<8x8x128xf32, #tpu.memory_space<vmem>>, vector<1x8x128xf32>
    %36 = vector.shape_cast %35 : vector<1x8x128xf32> to vector<8x128xf32>
    %cst_21 = arith.constant 1.000000e+02 : f32
    %37 = vector.broadcast %cst_21 : f32 to vector<8x128xf32>
    %38 = arith.subf %37, %36 : vector<8x128xf32>
    %cst_22 = arith.constant 0.0101010101 : f32
    %39 = vector.broadcast %cst_22 : f32 to vector<8x128xf32>
    %40 = arith.mulf %38, %39 : vector<8x128xf32>
    %41 = arith.mulf %40, %34 : vector<8x128xf32>
    %42 = arith.maximumf %28, %41 : vector<8x128xf32>
    %c3 = arith.constant 3 : index
    %c0_23 = arith.constant 0 : index
    %c0_24 = arith.constant 0 : index
    %43 = vector.load %arg1[%c3, %c0_23, %c0_24] : memref<8x8x128xi32, #tpu.memory_space<vmem>>, vector<1x8x128xi32>
    %44 = vector.shape_cast %43 : vector<1x8x128xi32> to vector<8x128xi32>
    %c0_i32_25 = arith.constant 0 : i32
    %45 = vector.broadcast %c0_i32_25 : i32 to vector<8x128xi32>
    %46 = arith.cmpi sge, %44, %45 : vector<8x128xi32>
    %47 = arith.extui %46 : vector<8x128xi1> to vector<8x128xi32>
    %48 = arith.sitofp %47 : vector<8x128xi32> to vector<8x128xf32>
    %c3_26 = arith.constant 3 : index
    %c0_27 = arith.constant 0 : index
    %c0_28 = arith.constant 0 : index
    %49 = vector.load %arg3[%c3_26, %c0_27, %c0_28] : memref<8x8x128xf32, #tpu.memory_space<vmem>>, vector<1x8x128xf32>
    %50 = vector.shape_cast %49 : vector<1x8x128xf32> to vector<8x128xf32>
    %cst_29 = arith.constant 1.000000e+02 : f32
    %51 = vector.broadcast %cst_29 : f32 to vector<8x128xf32>
    %52 = arith.subf %51, %50 : vector<8x128xf32>
    %cst_30 = arith.constant 0.0101010101 : f32
    %53 = vector.broadcast %cst_30 : f32 to vector<8x128xf32>
    %54 = arith.mulf %52, %53 : vector<8x128xf32>
    %55 = arith.mulf %54, %48 : vector<8x128xf32>
    %56 = arith.maximumf %42, %55 : vector<8x128xf32>
    %c4 = arith.constant 4 : index
    %c0_31 = arith.constant 0 : index
    %c0_32 = arith.constant 0 : index
    %57 = vector.load %arg1[%c4, %c0_31, %c0_32] : memref<8x8x128xi32, #tpu.memory_space<vmem>>, vector<1x8x128xi32>
    %58 = vector.shape_cast %57 : vector<1x8x128xi32> to vector<8x128xi32>
    %c0_i32_33 = arith.constant 0 : i32
    %59 = vector.broadcast %c0_i32_33 : i32 to vector<8x128xi32>
    %60 = arith.cmpi sge, %58, %59 : vector<8x128xi32>
    %61 = arith.extui %60 : vector<8x128xi1> to vector<8x128xi32>
    %62 = arith.sitofp %61 : vector<8x128xi32> to vector<8x128xf32>
    %c4_34 = arith.constant 4 : index
    %c0_35 = arith.constant 0 : index
    %c0_36 = arith.constant 0 : index
    %63 = vector.load %arg3[%c4_34, %c0_35, %c0_36] : memref<8x8x128xf32, #tpu.memory_space<vmem>>, vector<1x8x128xf32>
    %64 = vector.shape_cast %63 : vector<1x8x128xf32> to vector<8x128xf32>
    %cst_37 = arith.constant 1.000000e+02 : f32
    %65 = vector.broadcast %cst_37 : f32 to vector<8x128xf32>
    %66 = arith.subf %65, %64 : vector<8x128xf32>
    %cst_38 = arith.constant 0.0101010101 : f32
    %67 = vector.broadcast %cst_38 : f32 to vector<8x128xf32>
    %68 = arith.mulf %66, %67 : vector<8x128xf32>
    %69 = arith.mulf %68, %62 : vector<8x128xf32>
    %70 = arith.maximumf %56, %69 : vector<8x128xf32>
    %c5 = arith.constant 5 : index
    %c0_39 = arith.constant 0 : index
    %c0_40 = arith.constant 0 : index
    %71 = vector.load %arg1[%c5, %c0_39, %c0_40] : memref<8x8x128xi32, #tpu.memory_space<vmem>>, vector<1x8x128xi32>
    %72 = vector.shape_cast %71 : vector<1x8x128xi32> to vector<8x128xi32>
    %c0_i32_41 = arith.constant 0 : i32
    %73 = vector.broadcast %c0_i32_41 : i32 to vector<8x128xi32>
    %74 = arith.cmpi sge, %72, %73 : vector<8x128xi32>
    %75 = arith.extui %74 : vector<8x128xi1> to vector<8x128xi32>
    %76 = arith.sitofp %75 : vector<8x128xi32> to vector<8x128xf32>
    %c5_42 = arith.constant 5 : index
    %c0_43 = arith.constant 0 : index
    %c0_44 = arith.constant 0 : index
    %77 = vector.load %arg3[%c5_42, %c0_43, %c0_44] : memref<8x8x128xf32, #tpu.memory_space<vmem>>, vector<1x8x128xf32>
    %78 = vector.shape_cast %77 : vector<1x8x128xf32> to vector<8x128xf32>
    %cst_45 = arith.constant 1.000000e+02 : f32
    %79 = vector.broadcast %cst_45 : f32 to vector<8x128xf32>
    %80 = arith.subf %79, %78 : vector<8x128xf32>
    %cst_46 = arith.constant 0.0101010101 : f32
    %81 = vector.broadcast %cst_46 : f32 to vector<8x128xf32>
    %82 = arith.mulf %80, %81 : vector<8x128xf32>
    %83 = arith.mulf %82, %76 : vector<8x128xf32>
    %84 = arith.maximumf %70, %83 : vector<8x128xf32>
    %c6 = arith.constant 6 : index
    %c0_47 = arith.constant 0 : index
    %c0_48 = arith.constant 0 : index
    %85 = vector.load %arg1[%c6, %c0_47, %c0_48] : memref<8x8x128xi32, #tpu.memory_space<vmem>>, vector<1x8x128xi32>
    %86 = vector.shape_cast %85 : vector<1x8x128xi32> to vector<8x128xi32>
    %c0_i32_49 = arith.constant 0 : i32
    %87 = vector.broadcast %c0_i32_49 : i32 to vector<8x128xi32>
    %88 = arith.cmpi sge, %86, %87 : vector<8x128xi32>
    %89 = arith.extui %88 : vector<8x128xi1> to vector<8x128xi32>
    %90 = arith.sitofp %89 : vector<8x128xi32> to vector<8x128xf32>
    %c6_50 = arith.constant 6 : index
    %c0_51 = arith.constant 0 : index
    %c0_52 = arith.constant 0 : index
    %91 = vector.load %arg3[%c6_50, %c0_51, %c0_52] : memref<8x8x128xf32, #tpu.memory_space<vmem>>, vector<1x8x128xf32>
    %92 = vector.shape_cast %91 : vector<1x8x128xf32> to vector<8x128xf32>
    %cst_53 = arith.constant 1.000000e+02 : f32
    %93 = vector.broadcast %cst_53 : f32 to vector<8x128xf32>
    %94 = arith.subf %93, %92 : vector<8x128xf32>
    %cst_54 = arith.constant 0.0101010101 : f32
    %95 = vector.broadcast %cst_54 : f32 to vector<8x128xf32>
    %96 = arith.mulf %94, %95 : vector<8x128xf32>
    %97 = arith.mulf %96, %90 : vector<8x128xf32>
    %98 = arith.maximumf %84, %97 : vector<8x128xf32>
    %c7 = arith.constant 7 : index
    %c0_55 = arith.constant 0 : index
    %c0_56 = arith.constant 0 : index
    %99 = vector.load %arg1[%c7, %c0_55, %c0_56] : memref<8x8x128xi32, #tpu.memory_space<vmem>>, vector<1x8x128xi32>
    %100 = vector.shape_cast %99 : vector<1x8x128xi32> to vector<8x128xi32>
    %c0_i32_57 = arith.constant 0 : i32
    %101 = vector.broadcast %c0_i32_57 : i32 to vector<8x128xi32>
    %102 = arith.cmpi sge, %100, %101 : vector<8x128xi32>
    %103 = arith.extui %102 : vector<8x128xi1> to vector<8x128xi32>
    %104 = arith.sitofp %103 : vector<8x128xi32> to vector<8x128xf32>
    %c7_58 = arith.constant 7 : index
    %c0_59 = arith.constant 0 : index
    %c0_60 = arith.constant 0 : index
    %105 = vector.load %arg3[%c7_58, %c0_59, %c0_60] : memref<8x8x128xf32, #tpu.memory_space<vmem>>, vector<1x8x128xf32>
    %106 = vector.shape_cast %105 : vector<1x8x128xf32> to vector<8x128xf32>
    %cst_61 = arith.constant 1.000000e+02 : f32
    %107 = vector.broadcast %cst_61 : f32 to vector<8x128xf32>
    %108 = arith.subf %107, %106 : vector<8x128xf32>
    %cst_62 = arith.constant 0.0101010101 : f32
    %109 = vector.broadcast %cst_62 : f32 to vector<8x128xf32>
    %110 = arith.mulf %108, %109 : vector<8x128xf32>
    %111 = arith.mulf %110, %104 : vector<8x128xf32>
    %112 = arith.maximumf %98, %111 : vector<8x128xf32>
    %cst_63 = arith.constant 1.000000e-10 : f32
    %113 = vector.broadcast %cst_63 : f32 to vector<8x128xf32>
    %114 = arith.subf %113, %112 : vector<8x128xf32>
    %cst_64 = arith.constant 1.000000e+02 : f32
    %115 = vector.broadcast %cst_64 : f32 to vector<8x128xf32>
    %116 = arith.mulf %114, %115 : vector<8x128xf32>
    %117 = math.exp %116 : vector<8x128xf32>
    %cst_65 = arith.constant 1.000000e-10 : f32
    %118 = vector.broadcast %cst_65 : f32 to vector<8x128xf32>
    %119 = arith.maximumf %117, %118 : vector<8x128xf32>
    %cst_66 = arith.constant 1.000000e+00 : f32
    %120 = vector.broadcast %cst_66 : f32 to vector<8x128xf32>
    %cst_67 = arith.constant 0.000000e+00 : f32
    %121 = vector.broadcast %cst_67 : f32 to vector<8x128xf32>
    %cst_68 = arith.constant 0.000000e+00 : f32
    %122 = vector.broadcast %cst_68 : f32 to vector<8x128xf32>
    %cst_69 = arith.constant 0.000000e+00 : f32
    %123 = vector.broadcast %cst_69 : f32 to vector<8x128xf32>
    %c0_70 = arith.constant 0 : index
    %c0_71 = arith.constant 0 : index
    %c0_72 = arith.constant 0 : index
    %124 = vector.load %arg1[%c0_70, %c0_71, %c0_72] : memref<8x8x128xi32, #tpu.memory_space<vmem>>, vector<1x8x128xi32>
    %125 = vector.shape_cast %124 : vector<1x8x128xi32> to vector<8x128xi32>
    %c0_i32_73 = arith.constant 0 : i32
    %126 = vector.broadcast %c0_i32_73 : i32 to vector<8x128xi32>
    %127 = arith.cmpi sge, %125, %126 : vector<8x128xi32>
    %128 = arith.extui %127 : vector<8x128xi1> to vector<8x128xi32>
    %129 = arith.sitofp %128 : vector<8x128xi32> to vector<8x128xf32>
    %c0_74 = arith.constant 0 : index
    %c0_75 = arith.constant 0 : index
    %c0_76 = arith.constant 0 : index
    %130 = vector.load %arg2[%c0_74, %c0_75, %c0_76] : memref<8x8x128xf32, #tpu.memory_space<vmem>>, vector<1x8x128xf32>
    %131 = vector.shape_cast %130 : vector<1x8x128xf32> to vector<8x128xf32>
    %cst_77 = arith.constant 5.000000e+01 : f32
    %132 = vector.broadcast %cst_77 : f32 to vector<8x128xf32>
    %133 = arith.mulf %131, %132 : vector<8x128xf32>
    %134 = math.tanh %133 : vector<8x128xf32>
    %cst_78 = arith.constant 5.000000e-01 : f32
    %135 = vector.broadcast %cst_78 : f32 to vector<8x128xf32>
    %136 = arith.mulf %135, %134 : vector<8x128xf32>
    %cst_79 = arith.constant 5.000000e-01 : f32
    %137 = vector.broadcast %cst_79 : f32 to vector<8x128xf32>
    %138 = arith.subf %137, %136 : vector<8x128xf32>
    %139 = arith.mulf %138, %129 : vector<8x128xf32>
    %cst_80 = arith.constant 1.000000e+00 : f32
    %140 = vector.broadcast %cst_80 : f32 to vector<8x128xf32>
    %141 = arith.subf %140, %139 : vector<8x128xf32>
    %142 = arith.mulf %120, %141 : vector<8x128xf32>
    %c0_81 = arith.constant 0 : index
    %c0_82 = arith.constant 0 : index
    %c0_83 = arith.constant 0 : index
    %143 = vector.load %arg3[%c0_81, %c0_82, %c0_83] : memref<8x8x128xf32, #tpu.memory_space<vmem>>, vector<1x8x128xf32>
    %144 = vector.shape_cast %143 : vector<1x8x128xf32> to vector<8x128xf32>
    %cst_84 = arith.constant 1.000000e+02 : f32
    %145 = vector.broadcast %cst_84 : f32 to vector<8x128xf32>
    %146 = arith.subf %145, %144 : vector<8x128xf32>
    %cst_85 = arith.constant 0.0101010101 : f32
    %147 = vector.broadcast %cst_85 : f32 to vector<8x128xf32>
    %148 = arith.mulf %146, %147 : vector<8x128xf32>
    %149 = arith.mulf %148, %129 : vector<8x128xf32>
    %150 = arith.subf %149, %112 : vector<8x128xf32>
    %cst_86 = arith.constant 1.000000e+02 : f32
    %151 = vector.broadcast %cst_86 : f32 to vector<8x128xf32>
    %152 = arith.mulf %150, %151 : vector<8x128xf32>
    %153 = math.exp %152 : vector<8x128xf32>
    %154 = arith.mulf %139, %153 : vector<8x128xf32>
    %155 = arith.addf %119, %154 : vector<8x128xf32>
    %c0_87 = arith.constant 0 : index
    %c0_88 = arith.constant 0 : index
    %c0_89 = arith.constant 0 : index
    %c0_90 = arith.constant 0 : index
    %156 = vector.load %arg4[%c0_87, %c0_88, %c0_89, %c0_90] : memref<3x8x8x128xf32, #tpu.memory_space<vmem>>, vector<1x1x8x128xf32>
    %157 = vector.shape_cast %156 : vector<1x1x8x128xf32> to vector<8x128xf32>
    %158 = arith.mulf %154, %157 : vector<8x128xf32>
    %159 = arith.addf %121, %158 : vector<8x128xf32>
    %c1_91 = arith.constant 1 : index
    %c0_92 = arith.constant 0 : index
    %c0_93 = arith.constant 0 : index
    %c0_94 = arith.constant 0 : index
    %160 = vector.load %arg4[%c1_91, %c0_92, %c0_93, %c0_94] : memref<3x8x8x128xf32, #tpu.memory_space<vmem>>, vector<1x1x8x128xf32>
    %161 = vector.shape_cast %160 : vector<1x1x8x128xf32> to vector<8x128xf32>
    %162 = arith.mulf %154, %161 : vector<8x128xf32>
    %163 = arith.addf %122, %162 : vector<8x128xf32>
    %c2_95 = arith.constant 2 : index
    %c0_96 = arith.constant 0 : index
    %c0_97 = arith.constant 0 : index
    %c0_98 = arith.constant 0 : index
    %164 = vector.load %arg4[%c2_95, %c0_96, %c0_97, %c0_98] : memref<3x8x8x128xf32, #tpu.memory_space<vmem>>, vector<1x1x8x128xf32>
    %165 = vector.shape_cast %164 : vector<1x1x8x128xf32> to vector<8x128xf32>
    %166 = arith.mulf %154, %165 : vector<8x128xf32>
    %167 = arith.addf %123, %166 : vector<8x128xf32>
    %c1_99 = arith.constant 1 : index
    %c0_100 = arith.constant 0 : index
    %c0_101 = arith.constant 0 : index
    %168 = vector.load %arg1[%c1_99, %c0_100, %c0_101] : memref<8x8x128xi32, #tpu.memory_space<vmem>>, vector<1x8x128xi32>
    %169 = vector.shape_cast %168 : vector<1x8x128xi32> to vector<8x128xi32>
    %c0_i32_102 = arith.constant 0 : i32
    %170 = vector.broadcast %c0_i32_102 : i32 to vector<8x128xi32>
    %171 = arith.cmpi sge, %169, %170 : vector<8x128xi32>
    %172 = arith.extui %171 : vector<8x128xi1> to vector<8x128xi32>
    %173 = arith.sitofp %172 : vector<8x128xi32> to vector<8x128xf32>
    %c1_103 = arith.constant 1 : index
    %c0_104 = arith.constant 0 : index
    %c0_105 = arith.constant 0 : index
    %174 = vector.load %arg2[%c1_103, %c0_104, %c0_105] : memref<8x8x128xf32, #tpu.memory_space<vmem>>, vector<1x8x128xf32>
    %175 = vector.shape_cast %174 : vector<1x8x128xf32> to vector<8x128xf32>
    %cst_106 = arith.constant 5.000000e+01 : f32
    %176 = vector.broadcast %cst_106 : f32 to vector<8x128xf32>
    %177 = arith.mulf %175, %176 : vector<8x128xf32>
    %178 = math.tanh %177 : vector<8x128xf32>
    %cst_107 = arith.constant 5.000000e-01 : f32
    %179 = vector.broadcast %cst_107 : f32 to vector<8x128xf32>
    %180 = arith.mulf %179, %178 : vector<8x128xf32>
    %cst_108 = arith.constant 5.000000e-01 : f32
    %181 = vector.broadcast %cst_108 : f32 to vector<8x128xf32>
    %182 = arith.subf %181, %180 : vector<8x128xf32>
    %183 = arith.mulf %182, %173 : vector<8x128xf32>
    %cst_109 = arith.constant 1.000000e+00 : f32
    %184 = vector.broadcast %cst_109 : f32 to vector<8x128xf32>
    %185 = arith.subf %184, %183 : vector<8x128xf32>
    %186 = arith.mulf %142, %185 : vector<8x128xf32>
    %c1_110 = arith.constant 1 : index
    %c0_111 = arith.constant 0 : index
    %c0_112 = arith.constant 0 : index
    %187 = vector.load %arg3[%c1_110, %c0_111, %c0_112] : memref<8x8x128xf32, #tpu.memory_space<vmem>>, vector<1x8x128xf32>
    %188 = vector.shape_cast %187 : vector<1x8x128xf32> to vector<8x128xf32>
    %cst_113 = arith.constant 1.000000e+02 : f32
    %189 = vector.broadcast %cst_113 : f32 to vector<8x128xf32>
    %190 = arith.subf %189, %188 : vector<8x128xf32>
    %cst_114 = arith.constant 0.0101010101 : f32
    %191 = vector.broadcast %cst_114 : f32 to vector<8x128xf32>
    %192 = arith.mulf %190, %191 : vector<8x128xf32>
    %193 = arith.mulf %192, %173 : vector<8x128xf32>
    %194 = arith.subf %193, %112 : vector<8x128xf32>
    %cst_115 = arith.constant 1.000000e+02 : f32
    %195 = vector.broadcast %cst_115 : f32 to vector<8x128xf32>
    %196 = arith.mulf %194, %195 : vector<8x128xf32>
    %197 = math.exp %196 : vector<8x128xf32>
    %198 = arith.mulf %183, %197 : vector<8x128xf32>
    %199 = arith.addf %155, %198 : vector<8x128xf32>
    %c0_116 = arith.constant 0 : index
    %c1_117 = arith.constant 1 : index
    %c0_118 = arith.constant 0 : index
    %c0_119 = arith.constant 0 : index
    %200 = vector.load %arg4[%c0_116, %c1_117, %c0_118, %c0_119] : memref<3x8x8x128xf32, #tpu.memory_space<vmem>>, vector<1x1x8x128xf32>
    %201 = vector.shape_cast %200 : vector<1x1x8x128xf32> to vector<8x128xf32>
    %202 = arith.mulf %198, %201 : vector<8x128xf32>
    %203 = arith.addf %159, %202 : vector<8x128xf32>
    %c1_120 = arith.constant 1 : index
    %c1_121 = arith.constant 1 : index
    %c0_122 = arith.constant 0 : index
    %c0_123 = arith.constant 0 : index
    %204 = vector.load %arg4[%c1_120, %c1_121, %c0_122, %c0_123] : memref<3x8x8x128xf32, #tpu.memory_space<vmem>>, vector<1x1x8x128xf32>
    %205 = vector.shape_cast %204 : vector<1x1x8x128xf32> to vector<8x128xf32>
    %206 = arith.mulf %198, %205 : vector<8x128xf32>
    %207 = arith.addf %163, %206 : vector<8x128xf32>
    %c2_124 = arith.constant 2 : index
    %c1_125 = arith.constant 1 : index
    %c0_126 = arith.constant 0 : index
    %c0_127 = arith.constant 0 : index
    %208 = vector.load %arg4[%c2_124, %c1_125, %c0_126, %c0_127] : memref<3x8x8x128xf32, #tpu.memory_space<vmem>>, vector<1x1x8x128xf32>
    %209 = vector.shape_cast %208 : vector<1x1x8x128xf32> to vector<8x128xf32>
    %210 = arith.mulf %198, %209 : vector<8x128xf32>
    %211 = arith.addf %167, %210 : vector<8x128xf32>
    %c2_128 = arith.constant 2 : index
    %c0_129 = arith.constant 0 : index
    %c0_130 = arith.constant 0 : index
    %212 = vector.load %arg1[%c2_128, %c0_129, %c0_130] : memref<8x8x128xi32, #tpu.memory_space<vmem>>, vector<1x8x128xi32>
    %213 = vector.shape_cast %212 : vector<1x8x128xi32> to vector<8x128xi32>
    %c0_i32_131 = arith.constant 0 : i32
    %214 = vector.broadcast %c0_i32_131 : i32 to vector<8x128xi32>
    %215 = arith.cmpi sge, %213, %214 : vector<8x128xi32>
    %216 = arith.extui %215 : vector<8x128xi1> to vector<8x128xi32>
    %217 = arith.sitofp %216 : vector<8x128xi32> to vector<8x128xf32>
    %c2_132 = arith.constant 2 : index
    %c0_133 = arith.constant 0 : index
    %c0_134 = arith.constant 0 : index
    %218 = vector.load %arg2[%c2_132, %c0_133, %c0_134] : memref<8x8x128xf32, #tpu.memory_space<vmem>>, vector<1x8x128xf32>
    %219 = vector.shape_cast %218 : vector<1x8x128xf32> to vector<8x128xf32>
    %cst_135 = arith.constant 5.000000e+01 : f32
    %220 = vector.broadcast %cst_135 : f32 to vector<8x128xf32>
    %221 = arith.mulf %219, %220 : vector<8x128xf32>
    %222 = math.tanh %221 : vector<8x128xf32>
    %cst_136 = arith.constant 5.000000e-01 : f32
    %223 = vector.broadcast %cst_136 : f32 to vector<8x128xf32>
    %224 = arith.mulf %223, %222 : vector<8x128xf32>
    %cst_137 = arith.constant 5.000000e-01 : f32
    %225 = vector.broadcast %cst_137 : f32 to vector<8x128xf32>
    %226 = arith.subf %225, %224 : vector<8x128xf32>
    %227 = arith.mulf %226, %217 : vector<8x128xf32>
    %cst_138 = arith.constant 1.000000e+00 : f32
    %228 = vector.broadcast %cst_138 : f32 to vector<8x128xf32>
    %229 = arith.subf %228, %227 : vector<8x128xf32>
    %230 = arith.mulf %186, %229 : vector<8x128xf32>
    %c2_139 = arith.constant 2 : index
    %c0_140 = arith.constant 0 : index
    %c0_141 = arith.constant 0 : index
    %231 = vector.load %arg3[%c2_139, %c0_140, %c0_141] : memref<8x8x128xf32, #tpu.memory_space<vmem>>, vector<1x8x128xf32>
    %232 = vector.shape_cast %231 : vector<1x8x128xf32> to vector<8x128xf32>
    %cst_142 = arith.constant 1.000000e+02 : f32
    %233 = vector.broadcast %cst_142 : f32 to vector<8x128xf32>
    %234 = arith.subf %233, %232 : vector<8x128xf32>
    %cst_143 = arith.constant 0.0101010101 : f32
    %235 = vector.broadcast %cst_143 : f32 to vector<8x128xf32>
    %236 = arith.mulf %234, %235 : vector<8x128xf32>
    %237 = arith.mulf %236, %217 : vector<8x128xf32>
    %238 = arith.subf %237, %112 : vector<8x128xf32>
    %cst_144 = arith.constant 1.000000e+02 : f32
    %239 = vector.broadcast %cst_144 : f32 to vector<8x128xf32>
    %240 = arith.mulf %238, %239 : vector<8x128xf32>
    %241 = math.exp %240 : vector<8x128xf32>
    %242 = arith.mulf %227, %241 : vector<8x128xf32>
    %243 = arith.addf %199, %242 : vector<8x128xf32>
    %c0_145 = arith.constant 0 : index
    %c2_146 = arith.constant 2 : index
    %c0_147 = arith.constant 0 : index
    %c0_148 = arith.constant 0 : index
    %244 = vector.load %arg4[%c0_145, %c2_146, %c0_147, %c0_148] : memref<3x8x8x128xf32, #tpu.memory_space<vmem>>, vector<1x1x8x128xf32>
    %245 = vector.shape_cast %244 : vector<1x1x8x128xf32> to vector<8x128xf32>
    %246 = arith.mulf %242, %245 : vector<8x128xf32>
    %247 = arith.addf %203, %246 : vector<8x128xf32>
    %c1_149 = arith.constant 1 : index
    %c2_150 = arith.constant 2 : index
    %c0_151 = arith.constant 0 : index
    %c0_152 = arith.constant 0 : index
    %248 = vector.load %arg4[%c1_149, %c2_150, %c0_151, %c0_152] : memref<3x8x8x128xf32, #tpu.memory_space<vmem>>, vector<1x1x8x128xf32>
    %249 = vector.shape_cast %248 : vector<1x1x8x128xf32> to vector<8x128xf32>
    %250 = arith.mulf %242, %249 : vector<8x128xf32>
    %251 = arith.addf %207, %250 : vector<8x128xf32>
    %c2_153 = arith.constant 2 : index
    %c2_154 = arith.constant 2 : index
    %c0_155 = arith.constant 0 : index
    %c0_156 = arith.constant 0 : index
    %252 = vector.load %arg4[%c2_153, %c2_154, %c0_155, %c0_156] : memref<3x8x8x128xf32, #tpu.memory_space<vmem>>, vector<1x1x8x128xf32>
    %253 = vector.shape_cast %252 : vector<1x1x8x128xf32> to vector<8x128xf32>
    %254 = arith.mulf %242, %253 : vector<8x128xf32>
    %255 = arith.addf %211, %254 : vector<8x128xf32>
    %c3_157 = arith.constant 3 : index
    %c0_158 = arith.constant 0 : index
    %c0_159 = arith.constant 0 : index
    %256 = vector.load %arg1[%c3_157, %c0_158, %c0_159] : memref<8x8x128xi32, #tpu.memory_space<vmem>>, vector<1x8x128xi32>
    %257 = vector.shape_cast %256 : vector<1x8x128xi32> to vector<8x128xi32>
    %c0_i32_160 = arith.constant 0 : i32
    %258 = vector.broadcast %c0_i32_160 : i32 to vector<8x128xi32>
    %259 = arith.cmpi sge, %257, %258 : vector<8x128xi32>
    %260 = arith.extui %259 : vector<8x128xi1> to vector<8x128xi32>
    %261 = arith.sitofp %260 : vector<8x128xi32> to vector<8x128xf32>
    %c3_161 = arith.constant 3 : index
    %c0_162 = arith.constant 0 : index
    %c0_163 = arith.constant 0 : index
    %262 = vector.load %arg2[%c3_161, %c0_162, %c0_163] : memref<8x8x128xf32, #tpu.memory_space<vmem>>, vector<1x8x128xf32>
    %263 = vector.shape_cast %262 : vector<1x8x128xf32> to vector<8x128xf32>
    %cst_164 = arith.constant 5.000000e+01 : f32
    %264 = vector.broadcast %cst_164 : f32 to vector<8x128xf32>
    %265 = arith.mulf %263, %264 : vector<8x128xf32>
    %266 = math.tanh %265 : vector<8x128xf32>
    %cst_165 = arith.constant 5.000000e-01 : f32
    %267 = vector.broadcast %cst_165 : f32 to vector<8x128xf32>
    %268 = arith.mulf %267, %266 : vector<8x128xf32>
    %cst_166 = arith.constant 5.000000e-01 : f32
    %269 = vector.broadcast %cst_166 : f32 to vector<8x128xf32>
    %270 = arith.subf %269, %268 : vector<8x128xf32>
    %271 = arith.mulf %270, %261 : vector<8x128xf32>
    %cst_167 = arith.constant 1.000000e+00 : f32
    %272 = vector.broadcast %cst_167 : f32 to vector<8x128xf32>
    %273 = arith.subf %272, %271 : vector<8x128xf32>
    %274 = arith.mulf %230, %273 : vector<8x128xf32>
    %c3_168 = arith.constant 3 : index
    %c0_169 = arith.constant 0 : index
    %c0_170 = arith.constant 0 : index
    %275 = vector.load %arg3[%c3_168, %c0_169, %c0_170] : memref<8x8x128xf32, #tpu.memory_space<vmem>>, vector<1x8x128xf32>
    %276 = vector.shape_cast %275 : vector<1x8x128xf32> to vector<8x128xf32>
    %cst_171 = arith.constant 1.000000e+02 : f32
    %277 = vector.broadcast %cst_171 : f32 to vector<8x128xf32>
    %278 = arith.subf %277, %276 : vector<8x128xf32>
    %cst_172 = arith.constant 0.0101010101 : f32
    %279 = vector.broadcast %cst_172 : f32 to vector<8x128xf32>
    %280 = arith.mulf %278, %279 : vector<8x128xf32>
    %281 = arith.mulf %280, %261 : vector<8x128xf32>
    %282 = arith.subf %281, %112 : vector<8x128xf32>
    %cst_173 = arith.constant 1.000000e+02 : f32
    %283 = vector.broadcast %cst_173 : f32 to vector<8x128xf32>
    %284 = arith.mulf %282, %283 : vector<8x128xf32>
    %285 = math.exp %284 : vector<8x128xf32>
    %286 = arith.mulf %271, %285 : vector<8x128xf32>
    %287 = arith.addf %243, %286 : vector<8x128xf32>
    %c0_174 = arith.constant 0 : index
    %c3_175 = arith.constant 3 : index
    %c0_176 = arith.constant 0 : index
    %c0_177 = arith.constant 0 : index
    %288 = vector.load %arg4[%c0_174, %c3_175, %c0_176, %c0_177] : memref<3x8x8x128xf32, #tpu.memory_space<vmem>>, vector<1x1x8x128xf32>
    %289 = vector.shape_cast %288 : vector<1x1x8x128xf32> to vector<8x128xf32>
    %290 = arith.mulf %286, %289 : vector<8x128xf32>
    %291 = arith.addf %247, %290 : vector<8x128xf32>
    %c1_178 = arith.constant 1 : index
    %c3_179 = arith.constant 3 : index
    %c0_180 = arith.constant 0 : index
    %c0_181 = arith.constant 0 : index
    %292 = vector.load %arg4[%c1_178, %c3_179, %c0_180, %c0_181] : memref<3x8x8x128xf32, #tpu.memory_space<vmem>>, vector<1x1x8x128xf32>
    %293 = vector.shape_cast %292 : vector<1x1x8x128xf32> to vector<8x128xf32>
    %294 = arith.mulf %286, %293 : vector<8x128xf32>
    %295 = arith.addf %251, %294 : vector<8x128xf32>
    %c2_182 = arith.constant 2 : index
    %c3_183 = arith.constant 3 : index
    %c0_184 = arith.constant 0 : index
    %c0_185 = arith.constant 0 : index
    %296 = vector.load %arg4[%c2_182, %c3_183, %c0_184, %c0_185] : memref<3x8x8x128xf32, #tpu.memory_space<vmem>>, vector<1x1x8x128xf32>
    %297 = vector.shape_cast %296 : vector<1x1x8x128xf32> to vector<8x128xf32>
    %298 = arith.mulf %286, %297 : vector<8x128xf32>
    %299 = arith.addf %255, %298 : vector<8x128xf32>
    %c4_186 = arith.constant 4 : index
    %c0_187 = arith.constant 0 : index
    %c0_188 = arith.constant 0 : index
    %300 = vector.load %arg1[%c4_186, %c0_187, %c0_188] : memref<8x8x128xi32, #tpu.memory_space<vmem>>, vector<1x8x128xi32>
    %301 = vector.shape_cast %300 : vector<1x8x128xi32> to vector<8x128xi32>
    %c0_i32_189 = arith.constant 0 : i32
    %302 = vector.broadcast %c0_i32_189 : i32 to vector<8x128xi32>
    %303 = arith.cmpi sge, %301, %302 : vector<8x128xi32>
    %304 = arith.extui %303 : vector<8x128xi1> to vector<8x128xi32>
    %305 = arith.sitofp %304 : vector<8x128xi32> to vector<8x128xf32>
    %c4_190 = arith.constant 4 : index
    %c0_191 = arith.constant 0 : index
    %c0_192 = arith.constant 0 : index
    %306 = vector.load %arg2[%c4_190, %c0_191, %c0_192] : memref<8x8x128xf32, #tpu.memory_space<vmem>>, vector<1x8x128xf32>
    %307 = vector.shape_cast %306 : vector<1x8x128xf32> to vector<8x128xf32>
    %cst_193 = arith.constant 5.000000e+01 : f32
    %308 = vector.broadcast %cst_193 : f32 to vector<8x128xf32>
    %309 = arith.mulf %307, %308 : vector<8x128xf32>
    %310 = math.tanh %309 : vector<8x128xf32>
    %cst_194 = arith.constant 5.000000e-01 : f32
    %311 = vector.broadcast %cst_194 : f32 to vector<8x128xf32>
    %312 = arith.mulf %311, %310 : vector<8x128xf32>
    %cst_195 = arith.constant 5.000000e-01 : f32
    %313 = vector.broadcast %cst_195 : f32 to vector<8x128xf32>
    %314 = arith.subf %313, %312 : vector<8x128xf32>
    %315 = arith.mulf %314, %305 : vector<8x128xf32>
    %cst_196 = arith.constant 1.000000e+00 : f32
    %316 = vector.broadcast %cst_196 : f32 to vector<8x128xf32>
    %317 = arith.subf %316, %315 : vector<8x128xf32>
    %318 = arith.mulf %274, %317 : vector<8x128xf32>
    %c4_197 = arith.constant 4 : index
    %c0_198 = arith.constant 0 : index
    %c0_199 = arith.constant 0 : index
    %319 = vector.load %arg3[%c4_197, %c0_198, %c0_199] : memref<8x8x128xf32, #tpu.memory_space<vmem>>, vector<1x8x128xf32>
    %320 = vector.shape_cast %319 : vector<1x8x128xf32> to vector<8x128xf32>
    %cst_200 = arith.constant 1.000000e+02 : f32
    %321 = vector.broadcast %cst_200 : f32 to vector<8x128xf32>
    %322 = arith.subf %321, %320 : vector<8x128xf32>
    %cst_201 = arith.constant 0.0101010101 : f32
    %323 = vector.broadcast %cst_201 : f32 to vector<8x128xf32>
    %324 = arith.mulf %322, %323 : vector<8x128xf32>
    %325 = arith.mulf %324, %305 : vector<8x128xf32>
    %326 = arith.subf %325, %112 : vector<8x128xf32>
    %cst_202 = arith.constant 1.000000e+02 : f32
    %327 = vector.broadcast %cst_202 : f32 to vector<8x128xf32>
    %328 = arith.mulf %326, %327 : vector<8x128xf32>
    %329 = math.exp %328 : vector<8x128xf32>
    %330 = arith.mulf %315, %329 : vector<8x128xf32>
    %331 = arith.addf %287, %330 : vector<8x128xf32>
    %c0_203 = arith.constant 0 : index
    %c4_204 = arith.constant 4 : index
    %c0_205 = arith.constant 0 : index
    %c0_206 = arith.constant 0 : index
    %332 = vector.load %arg4[%c0_203, %c4_204, %c0_205, %c0_206] : memref<3x8x8x128xf32, #tpu.memory_space<vmem>>, vector<1x1x8x128xf32>
    %333 = vector.shape_cast %332 : vector<1x1x8x128xf32> to vector<8x128xf32>
    %334 = arith.mulf %330, %333 : vector<8x128xf32>
    %335 = arith.addf %291, %334 : vector<8x128xf32>
    %c1_207 = arith.constant 1 : index
    %c4_208 = arith.constant 4 : index
    %c0_209 = arith.constant 0 : index
    %c0_210 = arith.constant 0 : index
    %336 = vector.load %arg4[%c1_207, %c4_208, %c0_209, %c0_210] : memref<3x8x8x128xf32, #tpu.memory_space<vmem>>, vector<1x1x8x128xf32>
    %337 = vector.shape_cast %336 : vector<1x1x8x128xf32> to vector<8x128xf32>
    %338 = arith.mulf %330, %337 : vector<8x128xf32>
    %339 = arith.addf %295, %338 : vector<8x128xf32>
    %c2_211 = arith.constant 2 : index
    %c4_212 = arith.constant 4 : index
    %c0_213 = arith.constant 0 : index
    %c0_214 = arith.constant 0 : index
    %340 = vector.load %arg4[%c2_211, %c4_212, %c0_213, %c0_214] : memref<3x8x8x128xf32, #tpu.memory_space<vmem>>, vector<1x1x8x128xf32>
    %341 = vector.shape_cast %340 : vector<1x1x8x128xf32> to vector<8x128xf32>
    %342 = arith.mulf %330, %341 : vector<8x128xf32>
    %343 = arith.addf %299, %342 : vector<8x128xf32>
    %c5_215 = arith.constant 5 : index
    %c0_216 = arith.constant 0 : index
    %c0_217 = arith.constant 0 : index
    %344 = vector.load %arg1[%c5_215, %c0_216, %c0_217] : memref<8x8x128xi32, #tpu.memory_space<vmem>>, vector<1x8x128xi32>
    %345 = vector.shape_cast %344 : vector<1x8x128xi32> to vector<8x128xi32>
    %c0_i32_218 = arith.constant 0 : i32
    %346 = vector.broadcast %c0_i32_218 : i32 to vector<8x128xi32>
    %347 = arith.cmpi sge, %345, %346 : vector<8x128xi32>
    %348 = arith.extui %347 : vector<8x128xi1> to vector<8x128xi32>
    %349 = arith.sitofp %348 : vector<8x128xi32> to vector<8x128xf32>
    %c5_219 = arith.constant 5 : index
    %c0_220 = arith.constant 0 : index
    %c0_221 = arith.constant 0 : index
    %350 = vector.load %arg2[%c5_219, %c0_220, %c0_221] : memref<8x8x128xf32, #tpu.memory_space<vmem>>, vector<1x8x128xf32>
    %351 = vector.shape_cast %350 : vector<1x8x128xf32> to vector<8x128xf32>
    %cst_222 = arith.constant 5.000000e+01 : f32
    %352 = vector.broadcast %cst_222 : f32 to vector<8x128xf32>
    %353 = arith.mulf %351, %352 : vector<8x128xf32>
    %354 = math.tanh %353 : vector<8x128xf32>
    %cst_223 = arith.constant 5.000000e-01 : f32
    %355 = vector.broadcast %cst_223 : f32 to vector<8x128xf32>
    %356 = arith.mulf %355, %354 : vector<8x128xf32>
    %cst_224 = arith.constant 5.000000e-01 : f32
    %357 = vector.broadcast %cst_224 : f32 to vector<8x128xf32>
    %358 = arith.subf %357, %356 : vector<8x128xf32>
    %359 = arith.mulf %358, %349 : vector<8x128xf32>
    %cst_225 = arith.constant 1.000000e+00 : f32
    %360 = vector.broadcast %cst_225 : f32 to vector<8x128xf32>
    %361 = arith.subf %360, %359 : vector<8x128xf32>
    %362 = arith.mulf %318, %361 : vector<8x128xf32>
    %c5_226 = arith.constant 5 : index
    %c0_227 = arith.constant 0 : index
    %c0_228 = arith.constant 0 : index
    %363 = vector.load %arg3[%c5_226, %c0_227, %c0_228] : memref<8x8x128xf32, #tpu.memory_space<vmem>>, vector<1x8x128xf32>
    %364 = vector.shape_cast %363 : vector<1x8x128xf32> to vector<8x128xf32>
    %cst_229 = arith.constant 1.000000e+02 : f32
    %365 = vector.broadcast %cst_229 : f32 to vector<8x128xf32>
    %366 = arith.subf %365, %364 : vector<8x128xf32>
    %cst_230 = arith.constant 0.0101010101 : f32
    %367 = vector.broadcast %cst_230 : f32 to vector<8x128xf32>
    %368 = arith.mulf %366, %367 : vector<8x128xf32>
    %369 = arith.mulf %368, %349 : vector<8x128xf32>
    %370 = arith.subf %369, %112 : vector<8x128xf32>
    %cst_231 = arith.constant 1.000000e+02 : f32
    %371 = vector.broadcast %cst_231 : f32 to vector<8x128xf32>
    %372 = arith.mulf %370, %371 : vector<8x128xf32>
    %373 = math.exp %372 : vector<8x128xf32>
    %374 = arith.mulf %359, %373 : vector<8x128xf32>
    %375 = arith.addf %331, %374 : vector<8x128xf32>
    %c0_232 = arith.constant 0 : index
    %c5_233 = arith.constant 5 : index
    %c0_234 = arith.constant 0 : index
    %c0_235 = arith.constant 0 : index
    %376 = vector.load %arg4[%c0_232, %c5_233, %c0_234, %c0_235] : memref<3x8x8x128xf32, #tpu.memory_space<vmem>>, vector<1x1x8x128xf32>
    %377 = vector.shape_cast %376 : vector<1x1x8x128xf32> to vector<8x128xf32>
    %378 = arith.mulf %374, %377 : vector<8x128xf32>
    %379 = arith.addf %335, %378 : vector<8x128xf32>
    %c1_236 = arith.constant 1 : index
    %c5_237 = arith.constant 5 : index
    %c0_238 = arith.constant 0 : index
    %c0_239 = arith.constant 0 : index
    %380 = vector.load %arg4[%c1_236, %c5_237, %c0_238, %c0_239] : memref<3x8x8x128xf32, #tpu.memory_space<vmem>>, vector<1x1x8x128xf32>
    %381 = vector.shape_cast %380 : vector<1x1x8x128xf32> to vector<8x128xf32>
    %382 = arith.mulf %374, %381 : vector<8x128xf32>
    %383 = arith.addf %339, %382 : vector<8x128xf32>
    %c2_240 = arith.constant 2 : index
    %c5_241 = arith.constant 5 : index
    %c0_242 = arith.constant 0 : index
    %c0_243 = arith.constant 0 : index
    %384 = vector.load %arg4[%c2_240, %c5_241, %c0_242, %c0_243] : memref<3x8x8x128xf32, #tpu.memory_space<vmem>>, vector<1x1x8x128xf32>
    %385 = vector.shape_cast %384 : vector<1x1x8x128xf32> to vector<8x128xf32>
    %386 = arith.mulf %374, %385 : vector<8x128xf32>
    %387 = arith.addf %343, %386 : vector<8x128xf32>
    %c6_244 = arith.constant 6 : index
    %c0_245 = arith.constant 0 : index
    %c0_246 = arith.constant 0 : index
    %388 = vector.load %arg1[%c6_244, %c0_245, %c0_246] : memref<8x8x128xi32, #tpu.memory_space<vmem>>, vector<1x8x128xi32>
    %389 = vector.shape_cast %388 : vector<1x8x128xi32> to vector<8x128xi32>
    %c0_i32_247 = arith.constant 0 : i32
    %390 = vector.broadcast %c0_i32_247 : i32 to vector<8x128xi32>
    %391 = arith.cmpi sge, %389, %390 : vector<8x128xi32>
    %392 = arith.extui %391 : vector<8x128xi1> to vector<8x128xi32>
    %393 = arith.sitofp %392 : vector<8x128xi32> to vector<8x128xf32>
    %c6_248 = arith.constant 6 : index
    %c0_249 = arith.constant 0 : index
    %c0_250 = arith.constant 0 : index
    %394 = vector.load %arg2[%c6_248, %c0_249, %c0_250] : memref<8x8x128xf32, #tpu.memory_space<vmem>>, vector<1x8x128xf32>
    %395 = vector.shape_cast %394 : vector<1x8x128xf32> to vector<8x128xf32>
    %cst_251 = arith.constant 5.000000e+01 : f32
    %396 = vector.broadcast %cst_251 : f32 to vector<8x128xf32>
    %397 = arith.mulf %395, %396 : vector<8x128xf32>
    %398 = math.tanh %397 : vector<8x128xf32>
    %cst_252 = arith.constant 5.000000e-01 : f32
    %399 = vector.broadcast %cst_252 : f32 to vector<8x128xf32>
    %400 = arith.mulf %399, %398 : vector<8x128xf32>
    %cst_253 = arith.constant 5.000000e-01 : f32
    %401 = vector.broadcast %cst_253 : f32 to vector<8x128xf32>
    %402 = arith.subf %401, %400 : vector<8x128xf32>
    %403 = arith.mulf %402, %393 : vector<8x128xf32>
    %cst_254 = arith.constant 1.000000e+00 : f32
    %404 = vector.broadcast %cst_254 : f32 to vector<8x128xf32>
    %405 = arith.subf %404, %403 : vector<8x128xf32>
    %406 = arith.mulf %362, %405 : vector<8x128xf32>
    %c6_255 = arith.constant 6 : index
    %c0_256 = arith.constant 0 : index
    %c0_257 = arith.constant 0 : index
    %407 = vector.load %arg3[%c6_255, %c0_256, %c0_257] : memref<8x8x128xf32, #tpu.memory_space<vmem>>, vector<1x8x128xf32>
    %408 = vector.shape_cast %407 : vector<1x8x128xf32> to vector<8x128xf32>
    %cst_258 = arith.constant 1.000000e+02 : f32
    %409 = vector.broadcast %cst_258 : f32 to vector<8x128xf32>
    %410 = arith.subf %409, %408 : vector<8x128xf32>
    %cst_259 = arith.constant 0.0101010101 : f32
    %411 = vector.broadcast %cst_259 : f32 to vector<8x128xf32>
    %412 = arith.mulf %410, %411 : vector<8x128xf32>
    %413 = arith.mulf %412, %393 : vector<8x128xf32>
    %414 = arith.subf %413, %112 : vector<8x128xf32>
    %cst_260 = arith.constant 1.000000e+02 : f32
    %415 = vector.broadcast %cst_260 : f32 to vector<8x128xf32>
    %416 = arith.mulf %414, %415 : vector<8x128xf32>
    %417 = math.exp %416 : vector<8x128xf32>
    %418 = arith.mulf %403, %417 : vector<8x128xf32>
    %419 = arith.addf %375, %418 : vector<8x128xf32>
    %c0_261 = arith.constant 0 : index
    %c6_262 = arith.constant 6 : index
    %c0_263 = arith.constant 0 : index
    %c0_264 = arith.constant 0 : index
    %420 = vector.load %arg4[%c0_261, %c6_262, %c0_263, %c0_264] : memref<3x8x8x128xf32, #tpu.memory_space<vmem>>, vector<1x1x8x128xf32>
    %421 = vector.shape_cast %420 : vector<1x1x8x128xf32> to vector<8x128xf32>
    %422 = arith.mulf %418, %421 : vector<8x128xf32>
    %423 = arith.addf %379, %422 : vector<8x128xf32>
    %c1_265 = arith.constant 1 : index
    %c6_266 = arith.constant 6 : index
    %c0_267 = arith.constant 0 : index
    %c0_268 = arith.constant 0 : index
    %424 = vector.load %arg4[%c1_265, %c6_266, %c0_267, %c0_268] : memref<3x8x8x128xf32, #tpu.memory_space<vmem>>, vector<1x1x8x128xf32>
    %425 = vector.shape_cast %424 : vector<1x1x8x128xf32> to vector<8x128xf32>
    %426 = arith.mulf %418, %425 : vector<8x128xf32>
    %427 = arith.addf %383, %426 : vector<8x128xf32>
    %c2_269 = arith.constant 2 : index
    %c6_270 = arith.constant 6 : index
    %c0_271 = arith.constant 0 : index
    %c0_272 = arith.constant 0 : index
    %428 = vector.load %arg4[%c2_269, %c6_270, %c0_271, %c0_272] : memref<3x8x8x128xf32, #tpu.memory_space<vmem>>, vector<1x1x8x128xf32>
    %429 = vector.shape_cast %428 : vector<1x1x8x128xf32> to vector<8x128xf32>
    %430 = arith.mulf %418, %429 : vector<8x128xf32>
    %431 = arith.addf %387, %430 : vector<8x128xf32>
    %c7_273 = arith.constant 7 : index
    %c0_274 = arith.constant 0 : index
    %c0_275 = arith.constant 0 : index
    %432 = vector.load %arg1[%c7_273, %c0_274, %c0_275] : memref<8x8x128xi32, #tpu.memory_space<vmem>>, vector<1x8x128xi32>
    %433 = vector.shape_cast %432 : vector<1x8x128xi32> to vector<8x128xi32>
    %c0_i32_276 = arith.constant 0 : i32
    %434 = vector.broadcast %c0_i32_276 : i32 to vector<8x128xi32>
    %435 = arith.cmpi sge, %433, %434 : vector<8x128xi32>
    %436 = arith.extui %435 : vector<8x128xi1> to vector<8x128xi32>
    %437 = arith.sitofp %436 : vector<8x128xi32> to vector<8x128xf32>
    %c7_277 = arith.constant 7 : index
    %c0_278 = arith.constant 0 : index
    %c0_279 = arith.constant 0 : index
    %438 = vector.load %arg2[%c7_277, %c0_278, %c0_279] : memref<8x8x128xf32, #tpu.memory_space<vmem>>, vector<1x8x128xf32>
    %439 = vector.shape_cast %438 : vector<1x8x128xf32> to vector<8x128xf32>
    %cst_280 = arith.constant 5.000000e+01 : f32
    %440 = vector.broadcast %cst_280 : f32 to vector<8x128xf32>
    %441 = arith.mulf %439, %440 : vector<8x128xf32>
    %442 = math.tanh %441 : vector<8x128xf32>
    %cst_281 = arith.constant 5.000000e-01 : f32
    %443 = vector.broadcast %cst_281 : f32 to vector<8x128xf32>
    %444 = arith.mulf %443, %442 : vector<8x128xf32>
    %cst_282 = arith.constant 5.000000e-01 : f32
    %445 = vector.broadcast %cst_282 : f32 to vector<8x128xf32>
    %446 = arith.subf %445, %444 : vector<8x128xf32>
    %447 = arith.mulf %446, %437 : vector<8x128xf32>
    %cst_283 = arith.constant 1.000000e+00 : f32
    %448 = vector.broadcast %cst_283 : f32 to vector<8x128xf32>
    %449 = arith.subf %448, %447 : vector<8x128xf32>
    %450 = arith.mulf %406, %449 : vector<8x128xf32>
    %c7_284 = arith.constant 7 : index
    %c0_285 = arith.constant 0 : index
    %c0_286 = arith.constant 0 : index
    %451 = vector.load %arg3[%c7_284, %c0_285, %c0_286] : memref<8x8x128xf32, #tpu.memory_space<vmem>>, vector<1x8x128xf32>
    %452 = vector.shape_cast %451 : vector<1x8x128xf32> to vector<8x128xf32>
    %cst_287 = arith.constant 1.000000e+02 : f32
    %453 = vector.broadcast %cst_287 : f32 to vector<8x128xf32>
    %454 = arith.subf %453, %452 : vector<8x128xf32>
    %cst_288 = arith.constant 0.0101010101 : f32
    %455 = vector.broadcast %cst_288 : f32 to vector<8x128xf32>
    %456 = arith.mulf %454, %455 : vector<8x128xf32>
    %457 = arith.mulf %456, %437 : vector<8x128xf32>
    %458 = arith.subf %457, %112 : vector<8x128xf32>
    %cst_289 = arith.constant 1.000000e+02 : f32
    %459 = vector.broadcast %cst_289 : f32 to vector<8x128xf32>
    %460 = arith.mulf %458, %459 : vector<8x128xf32>
    %461 = math.exp %460 : vector<8x128xf32>
    %462 = arith.mulf %447, %461 : vector<8x128xf32>
    %463 = arith.addf %419, %462 : vector<8x128xf32>
    %c0_290 = arith.constant 0 : index
    %c7_291 = arith.constant 7 : index
    %c0_292 = arith.constant 0 : index
    %c0_293 = arith.constant 0 : index
    %464 = vector.load %arg4[%c0_290, %c7_291, %c0_292, %c0_293] : memref<3x8x8x128xf32, #tpu.memory_space<vmem>>, vector<1x1x8x128xf32>
    %465 = vector.shape_cast %464 : vector<1x1x8x128xf32> to vector<8x128xf32>
    %466 = arith.mulf %462, %465 : vector<8x128xf32>
    %467 = arith.addf %423, %466 : vector<8x128xf32>
    %c1_294 = arith.constant 1 : index
    %c7_295 = arith.constant 7 : index
    %c0_296 = arith.constant 0 : index
    %c0_297 = arith.constant 0 : index
    %468 = vector.load %arg4[%c1_294, %c7_295, %c0_296, %c0_297] : memref<3x8x8x128xf32, #tpu.memory_space<vmem>>, vector<1x1x8x128xf32>
    %469 = vector.shape_cast %468 : vector<1x1x8x128xf32> to vector<8x128xf32>
    %470 = arith.mulf %462, %469 : vector<8x128xf32>
    %471 = arith.addf %427, %470 : vector<8x128xf32>
    %c2_298 = arith.constant 2 : index
    %c7_299 = arith.constant 7 : index
    %c0_300 = arith.constant 0 : index
    %c0_301 = arith.constant 0 : index
    %472 = vector.load %arg4[%c2_298, %c7_299, %c0_300, %c0_301] : memref<3x8x8x128xf32, #tpu.memory_space<vmem>>, vector<1x1x8x128xf32>
    %473 = vector.shape_cast %472 : vector<1x1x8x128xf32> to vector<8x128xf32>
    %474 = arith.mulf %462, %473 : vector<8x128xf32>
    %475 = arith.addf %431, %474 : vector<8x128xf32>
    %476 = tpu.reciprocal %463 {approx = true} : vector<8x128xf32> -> vector<8x128xf32>
    %cst_302 = arith.constant 1.000000e+00 : f32
    %477 = vector.broadcast %cst_302 : f32 to vector<8x128xf32>
    %478 = arith.mulf %119, %477 : vector<8x128xf32>
    %479 = arith.addf %467, %478 : vector<8x128xf32>
    %480 = arith.mulf %479, %476 : vector<8x128xf32>
    %c0_303 = arith.constant 0 : index
    %c0_304 = arith.constant 0 : index
    %c0_305 = arith.constant 0 : index
    %481 = vector.load %arg5[%c0_303, %c0_304, %c0_305] : memref<4x8x128xf32, #tpu.memory_space<vmem>>, vector<1x8x128xf32>
    %482 = vector.shape_cast %481 : vector<1x8x128xf32> to vector<8x128xf32>
    %483 = vector.shape_cast %480 : vector<8x128xf32> to vector<1x8x128xf32>
    tpu.vector_store %arg5[%c0_303, %c0_304, %c0_305], %483 {strides = array<i32>} : memref<4x8x128xf32, #tpu.memory_space<vmem>>, vector<1x8x128xf32>,
    %cst_306 = arith.constant 1.000000e+00 : f32
    %484 = vector.broadcast %cst_306 : f32 to vector<8x128xf32>
    %485 = arith.mulf %119, %484 : vector<8x128xf32>
    %486 = arith.addf %471, %485 : vector<8x128xf32>
    %487 = arith.mulf %486, %476 : vector<8x128xf32>
    %c1_307 = arith.constant 1 : index
    %c0_308 = arith.constant 0 : index
    %c0_309 = arith.constant 0 : index
    %488 = vector.load %arg5[%c1_307, %c0_308, %c0_309] : memref<4x8x128xf32, #tpu.memory_space<vmem>>, vector<1x8x128xf32>
    %489 = vector.shape_cast %488 : vector<1x8x128xf32> to vector<8x128xf32>
    %490 = vector.shape_cast %487 : vector<8x128xf32> to vector<1x8x128xf32>
    tpu.vector_store %arg5[%c1_307, %c0_308, %c0_309], %490 {strides = array<i32>} : memref<4x8x128xf32, #tpu.memory_space<vmem>>, vector<1x8x128xf32>,
    %cst_310 = arith.constant 1.000000e+00 : f32
    %491 = vector.broadcast %cst_310 : f32 to vector<8x128xf32>
    %492 = arith.mulf %119, %491 : vector<8x128xf32>
    %493 = arith.addf %475, %492 : vector<8x128xf32>
    %494 = arith.mulf %493, %476 : vector<8x128xf32>
    %c2_311 = arith.constant 2 : index
    %c0_312 = arith.constant 0 : index
    %c0_313 = arith.constant 0 : index
    %495 = vector.load %arg5[%c2_311, %c0_312, %c0_313] : memref<4x8x128xf32, #tpu.memory_space<vmem>>, vector<1x8x128xf32>
    %496 = vector.shape_cast %495 : vector<1x8x128xf32> to vector<8x128xf32>
    %497 = vector.shape_cast %494 : vector<8x128xf32> to vector<1x8x128xf32>
    tpu.vector_store %arg5[%c2_311, %c0_312, %c0_313], %497 {strides = array<i32>} : memref<4x8x128xf32, #tpu.memory_space<vmem>>, vector<1x8x128xf32>,
    %cst_314 = arith.constant 1.000000e+00 : f32
    %498 = vector.broadcast %cst_314 : f32 to vector<8x128xf32>
    %499 = arith.subf %498, %450 : vector<8x128xf32>
    %c3_315 = arith.constant 3 : index
    %c0_316 = arith.constant 0 : index
    %c0_317 = arith.constant 0 : index
    %500 = vector.load %arg5[%c3_315, %c0_316, %c0_317] : memref<4x8x128xf32, #tpu.memory_space<vmem>>, vector<1x8x128xf32>
    %501 = vector.shape_cast %500 : vector<1x8x128xf32> to vector<8x128xf32>
    %502 = vector.shape_cast %499 : vector<8x128xf32> to vector<1x8x128xf32>
    tpu.vector_store %arg5[%c3_315, %c0_316, %c0_317], %502 {strides = array<i32>} : memref<4x8x128xf32, #tpu.memory_space<vmem>>, vector<1x8x128xf32>,
    return
  }
  func.func @transform_0(%arg0: i32) -> (i32, i32, i32) {
    %c0_i32 = arith.constant 0 : i32
    %c0_i32_0 = arith.constant 0 : i32
    %c0_i32_1 = arith.constant 0 : i32
    return %c0_i32, %arg0, %c0_i32_0 : i32, i32, i32
  }
  func.func @transform_1(%arg0: i32) -> (i32, i32, i32) {
    %c0_i32 = arith.constant 0 : i32
    %c0_i32_0 = arith.constant 0 : i32
    %c0_i32_1 = arith.constant 0 : i32
    return %c0_i32, %arg0, %c0_i32_0 : i32, i32, i32
  }
  func.func @transform_2(%arg0: i32) -> (i32, i32, i32) {
    %c0_i32 = arith.constant 0 : i32
    %c0_i32_0 = arith.constant 0 : i32
    %c0_i32_1 = arith.constant 0 : i32
    return %c0_i32, %arg0, %c0_i32_0 : i32, i32, i32
  }
  func.func @transform_3(%arg0: i32) -> (i32, i32, i32, i32) {
    %c0_i32 = arith.constant 0 : i32
    %c0_i32_0 = arith.constant 0 : i32
    %c0_i32_1 = arith.constant 0 : i32
    %c0_i32_2 = arith.constant 0 : i32
    return %c0_i32, %c0_i32_0, %arg0, %c0_i32_1 : i32, i32, i32, i32
  }
  func.func @transform_4(%arg0: i32) -> (i32, i32, i32) {
    %c0_i32 = arith.constant 0 : i32
    %c0_i32_0 = arith.constant 0 : i32
    %c0_i32_1 = arith.constant 0 : i32
    return %c0_i32, %arg0, %c0_i32_0 : i32, i32, i32
  }
}

</mosaic_0001>

<llo_original>
// kernel: tpu_custom_call.1
$region0: #{tpu_custom_call.1}
  #allocation0 [shape = 'u32[]', space=smem, size = 0x4, offset = 0x4, fixed_abs, tag = 'smem constant byte address 0x4 - core index']
  #allocation1 [shape = 'u32[144,128]{1,0:T(1,128)}', space=vmem, size = 0x12000, scoped, tag = 'internal scratch']
  %s0 = inlined_call_operand.hbm [shape: s32[8,8,128], index: 0, kind: input, shape index: {}]
  %s1 = inlined_call_operand.hbm [shape: f32[8,8,128], index: 1, kind: input, shape index: {}]
  %s2 = inlined_call_operand.hbm [shape: f32[8,8,128], index: 2, kind: input, shape index: {}]
  %s3 = inlined_call_operand.hbm [shape: f32[3,8,8,128], index: 3, kind: input, shape index: {}]
  %s4 = inlined_call_operand.hbm [shape: f32[4,8,128], index: 4, kind: output, shape index: {}]
  %s5 = sld [smem:[#allocation0]]
  $region42: #{tpu_custom_call.1} parent=0
    _
  %s7 = ssub.s32 1, %s5
  %s8 = scalar_select 0, %s7, %s5
  $region1: #{tpu_custom_call.1} parent=0
    #allocation2 [shape = 'u8[32768]{0}', space=vmem, size = 0x8000, scoped, tag = 'input window, operand 0, single buffered']
    #allocation3 [shape = 's32[1]{0}', space=sflag, size = 0x4, scoped, tag = 'scoped memory for tpu_custom_call.1']
    #allocation4 [shape = 's32[1]{0}', space=sflag, size = 0x4, scoped, tag = 'scoped memory for tpu_custom_call.1']
    #allocation5 [shape = 'u8[32768]{0}', space=vmem, size = 0x8000, scoped, tag = 'input window, operand 1, single buffered']
    #allocation6 [shape = 's32[1]{0}', space=sflag, size = 0x4, scoped, tag = 'scoped memory for tpu_custom_call.1']
    #allocation7 [shape = 'u8[32768]{0}', space=vmem, size = 0x8000, scoped, tag = 'input window, operand 2, single buffered']
    #allocation8 [shape = 'u8[98304]{0}', space=vmem, size = 0x18000, scoped, tag = 'input window, operand 3, single buffered']
    #allocation9 [shape = 's32[1]{0}', space=sflag, size = 0x4, scoped, tag = 'scoped memory for tpu_custom_call.1']
    #allocation10 [shape = 'u8[16384]{0}', space=vmem, size = 0x4000, scoped, tag = 'output window, operand 0, single buffered']
    %9 = vsyncpa [#allocation3], 0
    %10 = vsyncpa [#allocation6], 0
    %11 = vsyncpa [#allocation9], 0
    %12 = vsyncpa [#allocation4], 0
    // Predicated region
    $region2: #{tpu_custom_call.1} parent=1 // pred_check
      _
    $region3: #{tpu_custom_call.1} parent=1 // pred_check_branch
      %14 = sbr.rel (0) target = $region5
    $region4: #{tpu_custom_call.1} parent=1 // pred_region
      %s16 = ssub.s32 1024, 1024
      %17 = vsyncadd [#allocation3], %s16
      %s18 = sshll.u32 [#allocation2], 4
      %s19 = int_to_ptr.vmem [resolvable:$true] %s18
      %24 = dma.hbm_to_vmem [thread:$0]  %s0, 1024, %s19, [#allocation3], 128, 128, 8
    $region5: #{tpu_custom_call.1} parent=1 // pred_fallthru
      _
    // Predicated region
    $region6: #{tpu_custom_call.1} parent=1 // pred_check
      _
    $region7: #{tpu_custom_call.1} parent=1 // pred_check_branch
      %26 = sbr.rel (0) target = $region9
    $region8: #{tpu_custom_call.1} parent=1 // pred_region
      %s28 = ssub.s32 1024, 1024
      %29 = vsyncadd [#allocation6], %s28
      %s30 = sshll.u32 [#allocation5], 4
      %s31 = int_to_ptr.vmem [resolvable:$true] %s30
      %36 = dma.hbm_to_vmem [thread:$0]  %s1, 1024, %s31, [#allocation6], 128, 128, 8
    $region9: #{tpu_custom_call.1} parent=1 // pred_fallthru
      _
    // Predicated region
    $region10: #{tpu_custom_call.1} parent=1 // pred_check
      _
    $region11: #{tpu_custom_call.1} parent=1 // pred_check_branch
      %38 = sbr.rel (0) target = $region13
    $region12: #{tpu_custom_call.1} parent=1 // pred_region
      %s40 = ssub.s32 1024, 1024
      %41 = vsyncadd [#allocation6], %s40
      %s42 = sshll.u32 [#allocation7], 4
      %s43 = int_to_ptr.vmem [resolvable:$true] %s42
      %48 = dma.hbm_to_vmem [thread:$0]  %s2, 1024, %s43, [#allocation6], 128, 128, 8
    $region13: #{tpu_custom_call.1} parent=1 // pred_fallthru
      _
    // Predicated region
    $region14: #{tpu_custom_call.1} parent=1 // pred_check
      _
    $region15: #{tpu_custom_call.1} parent=1 // pred_check_branch
      %50 = sbr.rel (0) target = $region17
    $region16: #{tpu_custom_call.1} parent=1 // pred_region
      %s52 = ssub.s32 3072, 3072
      %53 = vsyncadd [#allocation9], %s52
      %s54 = sshll.u32 [#allocation8], 4
      %s55 = int_to_ptr.vmem [resolvable:$true] %s54
      %60 = dma.hbm_to_vmem [thread:$0]  %s3, 3072, %s55, [#allocation9], 128, 128, 8
    $region17: #{tpu_custom_call.1} parent=1 // pred_fallthru
      _
    // Predicated region
    $region18: #{tpu_custom_call.1} parent=1 // pred_check
      _
    $region19: #{tpu_custom_call.1} parent=1 // pred_check_branch
      %62 = sbr.rel (0) target = $region21
    $region20: #{tpu_custom_call.1} parent=1 // pred_region
      %63 = dma.done [#allocation3], 1024
    $region21: #{tpu_custom_call.1} parent=1 // pred_fallthru
      _
    // Predicated region
    $region22: #{tpu_custom_call.1} parent=1 // pred_check
      _
    $region23: #{tpu_custom_call.1} parent=1 // pred_check_branch
      %65 = sbr.rel (0) target = $region25
    $region24: #{tpu_custom_call.1} parent=1 // pred_region
      %66 = dma.done [#allocation6], 1024
    $region25: #{tpu_custom_call.1} parent=1 // pred_fallthru
      _
    // Predicated region
    $region26: #{tpu_custom_call.1} parent=1 // pred_check
      _
    $region27: #{tpu_custom_call.1} parent=1 // pred_check_branch
      %68 = sbr.rel (0) target = $region29
    $region28: #{tpu_custom_call.1} parent=1 // pred_region
      %69 = dma.done [#allocation6], 1024
    $region29: #{tpu_custom_call.1} parent=1 // pred_fallthru
      _
    // Predicated region
    $region30: #{tpu_custom_call.1} parent=1 // pred_check
      _
    $region31: #{tpu_custom_call.1} parent=1 // pred_check_branch
      %71 = sbr.rel (0) target = $region33
    $region32: #{tpu_custom_call.1} parent=1 // pred_region
      %72 = dma.done [#allocation9], 3072
    $region33: #{tpu_custom_call.1} parent=1 // pred_fallthru
      _
    %v73 = vld [vmem:[#allocation2] sm:$0xff]
    %vm74 = vcmp.ge.s32.totalorder %v73, 0
    %v75 = vsel %vm74, 1, 0
    %v76 = vcvt.s32.f32 %v75
    %v77 = vld [vmem:[#allocation7] sm:$0xff]
    %v78 = vsub.f32 100.0, %v77
    %v79 = vmul.f32 %v78, 0.01010101
    %v80 = vmul.f32 %v79, %v76
    %v81 = vmax.f32 %v80, 1e-10
    %s82 = scalar_lea.vmem [#allocation2], 8
    %v83 = vld [vmem:[%s82] sm:$0xff]
    %vm84 = vcmp.ge.s32.totalorder %v83, 0
    %v85 = vsel %vm84, 1, 0
    %v86 = vcvt.s32.f32 %v85
    %s87 = scalar_lea.vmem [#allocation7], 8
    %v88 = vld [vmem:[%s87] sm:$0xff]
    %v89 = vsub.f32 100.0, %v88
    %v90 = vmul.f32 %v89, 0.01010101
    %v91 = vmul.f32 %v90, %v86
    %v92 = vmax.f32 %v81, %v91
    %s93 = scalar_lea.vmem [#allocation2], 16
    %v94 = vld [vmem:[%s93] sm:$0xff]
    %vm95 = vcmp.ge.s32.totalorder %v94, 0
    %v96 = vsel %vm95, 1, 0
    %v97 = vcvt.s32.f32 %v96
    %s98 = scalar_lea.vmem [#allocation7], 16
    %v99 = vld [vmem:[%s98] sm:$0xff]
    %v100 = vsub.f32 100.0, %v99
    %v101 = vmul.f32 %v100, 0.01010101
    %v102 = vmul.f32 %v101, %v97
    %v103 = vmax.f32 %v92, %v102
    %s104 = scalar_lea.vmem [#allocation2], 24
    %v105 = vld [vmem:[%s104] sm:$0xff]
    %vm106 = vcmp.ge.s32.totalorder %v105, 0
    %v107 = vsel %vm106, 1, 0
    %v108 = vcvt.s32.f32 %v107
    %s109 = scalar_lea.vmem [#allocation7], 24
    %v110 = vld [vmem:[%s109] sm:$0xff]
    %v111 = vsub.f32 100.0, %v110
    %v112 = vmul.f32 %v111, 0.01010101
    %v113 = vmul.f32 %v112, %v108
    %v114 = vmax.f32 %v103, %v113
    %s115 = scalar_lea.vmem [#allocation2], 32
    %v116 = vld [vmem:[%s115] sm:$0xff]
    %vm117 = vcmp.ge.s32.totalorder %v116, 0
    %v118 = vsel %vm117, 1, 0
    %v119 = vcvt.s32.f32 %v118
    %s120 = scalar_lea.vmem [#allocation7], 32
    %v121 = vld [vmem:[%s120] sm:$0xff]
    %v122 = vsub.f32 100.0, %v121
    %v123 = vmul.f32 %v122, 0.01010101
    %v124 = vmul.f32 %v123, %v119
    %v125 = vmax.f32 %v114, %v124
    %s126 = scalar_lea.vmem [#allocation2], 40
    %v127 = vld [vmem:[%s126] sm:$0xff]
    %vm128 = vcmp.ge.s32.totalorder %v127, 0
    %v129 = vsel %vm128, 1, 0
    %v130 = vcvt.s32.f32 %v129
    %s131 = scalar_lea.vmem [#allocation7], 40
    %v132 = vld [vmem:[%s131] sm:$0xff]
    %v133 = vsub.f32 100.0, %v132
    %v134 = vmul.f32 %v133, 0.01010101
    %v135 = vmul.f32 %v134, %v130
    %v136 = vmax.f32 %v125, %v135
    %s137 = scalar_lea.vmem [#allocation2], 48
    %v138 = vld [vmem:[%s137] sm:$0xff]
    %vm139 = vcmp.ge.s32.totalorder %v138, 0
    %v140 = vsel %vm139, 1, 0
    %v141 = vcvt.s32.f32 %v140
    %s142 = scalar_lea.vmem [#allocation7], 48
    %v143 = vld [vmem:[%s142] sm:$0xff]
    %v144 = vsub.f32 100.0, %v143
    %v145 = vmul.f32 %v144, 0.01010101
    %v146 = vmul.f32 %v145, %v141
    %v147 = vmax.f32 %v136, %v146
    %s148 = scalar_lea.vmem [#allocation2], 56
    %v149 = vld [vmem:[%s148] sm:$0xff]
    %vm150 = vcmp.ge.s32.totalorder %v149, 0
    %v151 = vsel %vm150, 1, 0
    %v152 = vcvt.s32.f32 %v151
    %s153 = scalar_lea.vmem [#allocation7], 56
    %v154 = vld [vmem:[%s153] sm:$0xff]
    %v155 = vsub.f32 100.0, %v154
    %v156 = vmul.f32 %v155, 0.01010101
    %v157 = vmul.f32 %v156, %v152
    %v158 = vmax.f32 %v147, %v157
    %v159 = vsub.f32 1e-10, %v158
    %v160 = vmul.f32 %v159, 100.0
    %v161 = vmul.f32 %v160, 1.442695
    %v162 = vpow.pop %v161
    %v163 = vmax.f32 %v162, 1e-10
    %v164 = vld [vmem:[#allocation5] sm:$0xff]
    %v165 = vmul.f32 %v164, 50.0
    %v166 = vtanh.pop %v165
    %v167 = vmul.f32 %v166, 0.5
    %v168 = vsub.f32 0.5, %v167
    %v169 = vmul.f32 %v168, %v76
    %v170 = vsub.f32 1.0, %v169
    %v171 = vsub.f32 %v80, %v158
    %v172 = vmul.f32 %v171, 100.0
    %v173 = vmul.f32 %v172, 1.442695
    %v174 = vpow.pop %v173
    %v175 = vmul.f32 %v169, %v174
    %v176 = vadd.f32 %v163, %v175
    %v177 = vld [vmem:[#allocation8] sm:$0xff]
    %v178 = vmul.f32 %v175, %v177
    %v179 = vadd.f32 %v178, 0.0
    %s180 = scalar_lea.vmem [#allocation8], 64
    %v181 = vld [vmem:[%s180] sm:$0xff]
    %v182 = vmul.f32 %v175, %v181
    %v183 = vadd.f32 %v182, 0.0
    %s184 = scalar_lea.vmem [#allocation8], 128
    %v185 = vld [vmem:[%s184] sm:$0xff]
    %v186 = vmul.f32 %v175, %v185
    %v187 = vadd.f32 %v186, 0.0
    %s188 = scalar_lea.vmem [#allocation5], 8
    %v189 = vld [vmem:[%s188] sm:$0xff]
    %v190 = vmul.f32 %v189, 50.0
    %v191 = vtanh.pop %v190
    %v192 = vmul.f32 %v191, 0.5
    %v193 = vsub.f32 0.5, %v192
    %v194 = vmul.f32 %v193, %v86
    %v195 = vsub.f32 1.0, %v194
    %v196 = vmul.f32 %v170, %v195
    %v197 = vsub.f32 %v91, %v158
    %v198 = vmul.f32 %v197, 100.0
    %v199 = vmul.f32 %v198, 1.442695
    %v200 = vpow.pop %v199
    %v201 = vmul.f32 %v194, %v200
    %v202 = vadd.f32 %v176, %v201
    %s203 = scalar_lea.vmem [#allocation8], 8
    %v204 = vld [vmem:[%s203] sm:$0xff]
    %v205 = vmul.f32 %v201, %v204
    %v206 = vadd.f32 %v179, %v205
    %s207 = scalar_lea.vmem [#allocation8], 72
    %v208 = vld [vmem:[%s207] sm:$0xff]
    %v209 = vmul.f32 %v201, %v208
    %v210 = vadd.f32 %v183, %v209
    %s211 = scalar_lea.vmem [#allocation8], 136
    %v212 = vld [vmem:[%s211] sm:$0xff]
    %v213 = vmul.f32 %v201, %v212
    %v214 = vadd.f32 %v187, %v213
    %s215 = scalar_lea.vmem [#allocation5], 16
    %v216 = vld [vmem:[%s215] sm:$0xff]
    %v217 = vmul.f32 %v216, 50.0
    %v218 = vtanh.pop %v217
    %v219 = vmul.f32 %v218, 0.5
    %v220 = vsub.f32 0.5, %v219
    %v221 = vmul.f32 %v220, %v97
    %v222 = vsub.f32 1.0, %v221
    %v223 = vmul.f32 %v196, %v222
    %v224 = vsub.f32 %v102, %v158
    %v225 = vmul.f32 %v224, 100.0
    %v226 = vmul.f32 %v225, 1.442695
    %v227 = vpow.pop %v226
    %v228 = vmul.f32 %v221, %v227
    %v229 = vadd.f32 %v202, %v228
    %s230 = scalar_lea.vmem [#allocation8], 16
    %v231 = vld [vmem:[%s230] sm:$0xff]
    %v232 = vmul.f32 %v228, %v231
    %v233 = vadd.f32 %v206, %v232
    %s234 = scalar_lea.vmem [#allocation8], 80
    %v235 = vld [vmem:[%s234] sm:$0xff]
    %v236 = vmul.f32 %v228, %v235
    %v237 = vadd.f32 %v210, %v236
    %s238 = scalar_lea.vmem [#allocation8], 144
    %v239 = vld [vmem:[%s238] sm:$0xff]
    %v240 = vmul.f32 %v228, %v239
    %v241 = vadd.f32 %v214, %v240
    %s242 = scalar_lea.vmem [#allocation5], 24
    %v243 = vld [vmem:[%s242] sm:$0xff]
    %v244 = vmul.f32 %v243, 50.0
    %v245 = vtanh.pop %v244
    %v246 = vmul.f32 %v245, 0.5
    %v247 = vsub.f32 0.5, %v246
    %v248 = vmul.f32 %v247, %v108
    %v249 = vsub.f32 1.0, %v248
    %v250 = vmul.f32 %v223, %v249
    %v251 = vsub.f32 %v113, %v158
    %v252 = vmul.f32 %v251, 100.0
    %v253 = vmul.f32 %v252, 1.442695
    %v254 = vpow.pop %v253
    %v255 = vmul.f32 %v248, %v254
    %v256 = vadd.f32 %v229, %v255
    %s257 = scalar_lea.vmem [#allocation8], 24
    %v258 = vld [vmem:[%s257] sm:$0xff]
    %v259 = vmul.f32 %v255, %v258
    %v260 = vadd.f32 %v233, %v259
    %s261 = scalar_lea.vmem [#allocation8], 88
    %v262 = vld [vmem:[%s261] sm:$0xff]
    %v263 = vmul.f32 %v255, %v262
    %v264 = vadd.f32 %v237, %v263
    %s265 = scalar_lea.vmem [#allocation8], 152
    %v266 = vld [vmem:[%s265] sm:$0xff]
    %v267 = vmul.f32 %v255, %v266
    %v268 = vadd.f32 %v241, %v267
    %s269 = scalar_lea.vmem [#allocation5], 32
    %v270 = vld [vmem:[%s269] sm:$0xff]
    %v271 = vmul.f32 %v270, 50.0
    %v272 = vtanh.pop %v271
    %v273 = vmul.f32 %v272, 0.5
    %v274 = vsub.f32 0.5, %v273
    %v275 = vmul.f32 %v274, %v119
    %v276 = vsub.f32 1.0, %v275
    %v277 = vmul.f32 %v250, %v276
    %v278 = vsub.f32 %v124, %v158
    %v279 = vmul.f32 %v278, 100.0
    %v280 = vmul.f32 %v279, 1.442695
    %v281 = vpow.pop %v280
    %v282 = vmul.f32 %v275, %v281
    %v283 = vadd.f32 %v256, %v282
    %s284 = scalar_lea.vmem [#allocation8], 32
    %v285 = vld [vmem:[%s284] sm:$0xff]
    %v286 = vmul.f32 %v282, %v285
    %v287 = vadd.f32 %v260, %v286
    %s288 = scalar_lea.vmem [#allocation8], 96
    %v289 = vld [vmem:[%s288] sm:$0xff]
    %v290 = vmul.f32 %v282, %v289
    %v291 = vadd.f32 %v264, %v290
    %s292 = scalar_lea.vmem [#allocation8], 160
    %v293 = vld [vmem:[%s292] sm:$0xff]
    %v294 = vmul.f32 %v282, %v293
    %v295 = vadd.f32 %v268, %v294
    %s296 = scalar_lea.vmem [#allocation5], 40
    %v297 = vld [vmem:[%s296] sm:$0xff]
    %v298 = vmul.f32 %v297, 50.0
    %v299 = vtanh.pop %v298
    %v300 = vmul.f32 %v299, 0.5
    %v301 = vsub.f32 0.5, %v300
    %v302 = vmul.f32 %v301, %v130
    %v303 = vsub.f32 1.0, %v302
    %v304 = vmul.f32 %v277, %v303
    %v305 = vsub.f32 %v135, %v158
    %v306 = vmul.f32 %v305, 100.0
    %v307 = vmul.f32 %v306, 1.442695
    %v308 = vpow.pop %v307
    %v309 = vmul.f32 %v302, %v308
    %v310 = vadd.f32 %v283, %v309
    %s311 = scalar_lea.vmem [#allocation8], 40
    %v312 = vld [vmem:[%s311] sm:$0xff]
    %v313 = vmul.f32 %v309, %v312
    %v314 = vadd.f32 %v287, %v313
    %s315 = scalar_lea.vmem [#allocation8], 104
    %v316 = vld [vmem:[%s315] sm:$0xff]
    %v317 = vmul.f32 %v309, %v316
    %v318 = vadd.f32 %v291, %v317
    %s319 = scalar_lea.vmem [#allocation8], 168
    %v320 = vld [vmem:[%s319] sm:$0xff]
    %v321 = vmul.f32 %v309, %v320
    %v322 = vadd.f32 %v295, %v321
    %s323 = scalar_lea.vmem [#allocation5], 48
    %v324 = vld [vmem:[%s323] sm:$0xff]
    %v325 = vmul.f32 %v324, 50.0
    %v326 = vtanh.pop %v325
    %v327 = vmul.f32 %v326, 0.5
    %v328 = vsub.f32 0.5, %v327
    %v329 = vmul.f32 %v328, %v141
    %v330 = vsub.f32 1.0, %v329
    %v331 = vmul.f32 %v304, %v330
    %v332 = vsub.f32 %v146, %v158
    %v333 = vmul.f32 %v332, 100.0
    %v334 = vmul.f32 %v333, 1.442695
    %v335 = vpow.pop %v334
    %v336 = vmul.f32 %v329, %v335
    %v337 = vadd.f32 %v310, %v336
    %s338 = scalar_lea.vmem [#allocation8], 48
    %v339 = vld [vmem:[%s338] sm:$0xff]
    %v340 = vmul.f32 %v336, %v339
    %v341 = vadd.f32 %v314, %v340
    %s342 = scalar_lea.vmem [#allocation8], 112
    %v343 = vld [vmem:[%s342] sm:$0xff]
    %v344 = vmul.f32 %v336, %v343
    %v345 = vadd.f32 %v318, %v344
    %s346 = scalar_lea.vmem [#allocation8], 176
    %v347 = vld [vmem:[%s346] sm:$0xff]
    %v348 = vmul.f32 %v336, %v347
    %v349 = vadd.f32 %v322, %v348
    %s350 = scalar_lea.vmem [#allocation5], 56
    %v351 = vld [vmem:[%s350] sm:$0xff]
    %v352 = vmul.f32 %v351, 50.0
    %v353 = vtanh.pop %v352
    %v354 = vmul.f32 %v353, 0.5
    %v355 = vsub.f32 0.5, %v354
    %v356 = vmul.f32 %v355, %v152
    %v357 = vsub.f32 1.0, %v356
    %v358 = vmul.f32 %v331, %v357
    %v359 = vsub.f32 %v157, %v158
    %v360 = vmul.f32 %v359, 100.0
    %v361 = vmul.f32 %v360, 1.442695
    %v362 = vpow.pop %v361
    %v363 = vmul.f32 %v356, %v362
    %v364 = vadd.f32 %v337, %v363
    %s365 = scalar_lea.vmem [#allocation8], 56
    %v366 = vld [vmem:[%s365] sm:$0xff]
    %v367 = vmul.f32 %v363, %v366
    %v368 = vadd.f32 %v341, %v367
    %s369 = scalar_lea.vmem [#allocation8], 120
    %v370 = vld [vmem:[%s369] sm:$0xff]
    %v371 = vmul.f32 %v363, %v370
    %v372 = vadd.f32 %v345, %v371
    %s373 = scalar_lea.vmem [#allocation8], 184
    %v374 = vld [vmem:[%s373] sm:$0xff]
    %v375 = vmul.f32 %v363, %v374
    %v376 = vadd.f32 %v349, %v375
    %v377 = vrcp.pop %v364
    %v378 = vadd.f32 %v368, %v163
    %v379 = vmul.f32 %v378, %v377
    %380 = vst [vmem:[#allocation10] sm:$0xff] %v379
    %v381 = vadd.f32 %v372, %v163
    %v382 = vmul.f32 %v381, %v377
    %s383 = scalar_lea.vmem [#allocation10], 8
    %384 = vst [vmem:[%s383] sm:$0xff] %v382
    %v385 = vadd.f32 %v376, %v163
    %v386 = vmul.f32 %v385, %v377
    %s387 = scalar_lea.vmem [#allocation10], 16
    %388 = vst [vmem:[%s387] sm:$0xff] %v386
    %v389 = vsub.f32 1.0, %v358
    %s390 = scalar_lea.vmem [#allocation10], 24
    %391 = vst [vmem:[%s390] sm:$0xff] %v389
    // Predicated region
    $region34: #{tpu_custom_call.1} parent=1 // pred_check
      _
    $region35: #{tpu_custom_call.1} parent=1 // pred_check_branch
      %393 = sbr.rel (0) target = $region37
    $region36: #{tpu_custom_call.1} parent=1 // pred_region
      %s395 = ssub.s32 512, 512
      %396 = vsyncadd [#allocation4], %s395
      %s397 = sshll.u32 [#allocation10], 4
      %s398 = int_to_ptr.vmem [resolvable:$true] %s397
      %403 = dma.vmem_to_hbm [thread:$0]  %s398, 512, %s4, [#allocation4], 128, 128, 8
    $region37: #{tpu_custom_call.1} parent=1 // pred_fallthru
      _
    // Predicated region
    $region38: #{tpu_custom_call.1} parent=1 // pred_check
      _
    $region39: #{tpu_custom_call.1} parent=1 // pred_check_branch
      %405 = sbr.rel (0) target = $region41
    $region40: #{tpu_custom_call.1} parent=1 // pred_region
      %406 = dma.done [#allocation4], 512
    $region41: #{tpu_custom_call.1} parent=1 // pred_fallthru
      _
    %407 = vsyncpa [#allocation3], 1
    %408 = vsyncpa [#allocation6], 1
    %409 = vsyncpa [#allocation9], 1
    %410 = vsyncpa [#allocation4], 1

</llo_original>
